<compile_context>
chip_gen: v7x
topology: tpu7x:2x2x1
jax: 0.10.0
libtpu: 0.0.40
codegen_flags: <defaults>
</compile_context>

<pallas_src>
import functools

import jax
import jax.numpy as jnp
from jax.experimental import pallas as pl
from jax.experimental.pallas import tpu as pltpu


def _round_up(x, m):
    return (x + m - 1) // m * m


def _vreg_padded_bytes(shape, itemsize):
    """Rough VMEM footprint of an array (last two dims padded to (8, 128))."""
    s = list(shape)
    s[-1] = _round_up(s[-1], 128)
    if len(s) >= 2:
        s[-2] = _round_up(s[-2], 8)
    n = 1
    for d in s:
        n *= d
    return n * itemsize


def _banked_merge_kernel(x_ref, sel_ref, prob_ref, w_ref, bias_ref, o_ref,
                         y_ref, coeff_ref, *, num_banks):
    """Grid = (batch blocks [parallel], d_model tiles [arbitrary, inner]).

    x_ref    : VMEM (Bblk, H, d_head) f32          (blocked by batch)
    sel_ref  : VMEM (Bblk, H) int32                (blocked by batch)
    prob_ref : VMEM (Bblk, H) f32                  (blocked by batch)
    w_ref    : VMEM (n_blocks, K, tile_n)          (whole table, resident)
    bias_ref : VMEM (n_blocks, num_banks, tile_n)  (whole table, resident, f32)
    o_ref    : VMEM (Bblk, tile_n) f32             (blocked by batch, d_model)
    y_ref    : VMEM scratch (Bblk, K)              (K = num_banks * d_head)
    coeff_ref: VMEM scratch (Bblk, num_banks) f32
    """
    j = pl.program_id(1)

    # Build the routing-folded MXU LHS once per batch block and reuse it for
    # every d_model tile:
    #   Y[b, k*d_head + d] = sum_h [sel[b,h]==k] * prob[b,h] * x[b,h,d]
    #   coeff[b, k]        = sum_h [sel[b,h]==k] * prob[b,h]
    @pl.when(j == 0)
    def _():
        x = x_ref[...].astype(jnp.float32)          # (Bblk, H, d_head)
        sel = sel_ref[...]                          # (Bblk, H) int32
        prob = prob_ref[...].astype(jnp.float32)    # (Bblk, H)
        strips = []
        coeff_cols = []
        # num_banks is a small compile-time constant (== num_heads).
        for k in range(num_banks):
            wp = jnp.where(sel == k, prob, 0.0)                     # (Bblk, H)
            strips.append(jnp.sum(wp[:, :, None] * x, axis=1))      # (Bblk, dh)
            coeff_cols.append(jnp.sum(wp, axis=1, keepdims=True))   # (Bblk, 1)
        y_ref[...] = jnp.concatenate(strips, axis=-1).astype(y_ref.dtype)
        coeff_ref[...] = jnp.concatenate(coeff_cols, axis=-1)

    # One fused MXU matmul over K = num_banks * d_head, plus a tiny
    # coeffs @ bias matmul for the bank biases; f32 accumulation throughout.
    w_j = w_ref[j]                                   # (K, tile_n)
    b_j = bias_ref[j]                                # (num_banks, tile_n) f32
    acc = jnp.dot(y_ref[...], w_j, preferred_element_type=jnp.float32)
    acc = acc + jnp.dot(coeff_ref[...], b_j, preferred_element_type=jnp.float32)
    o_ref[...] = acc.astype(o_ref.dtype)


def banked_merge_heads(x, head_selection, head_probabilities, W, bias, *,
                       block_b=256, block_n=512,
                       compute_dtype=jnp.bfloat16):
    """x: (B, H, d_head); head_selection: (B, H) int; head_probabilities:
    (B, H); W: (num_banks, d_head, d_model); bias: (num_banks, d_model)
    ->  (B, d_model) f32.

    block_b: batch rows per block (use 128 on v5e, 256 on v6e/v7x).
    block_n: d_model columns per tile (bounds the live accumulator).
    compute_dtype: dtype of W and of the matmul LHS Y (bf16 recommended on
    v6e/v7x; accumulation is always f32).
    """
    B, H, d_head = x.shape
    num_banks, dh_w, d_model = W.shape
    assert dh_w == d_head and bias.shape == (num_banks, d_model)
    assert head_selection.shape == (B, H)
    assert head_probabilities.shape == (B, H)

    k_dim = num_banks * d_head

    # d_model tiling: lane-dense (multiple of 128) tiles of at most block_n.
    tile_n = min(_round_up(block_n, 128), _round_up(d_model, 128))
    d_model_p = _round_up(d_model, tile_n)
    n_blocks = d_model_p // tile_n

    # Batch blocking: sublane-dense (multiple of 8) blocks.
    b_blk = min(block_b, _round_up(B, 8))
    B_p = _round_up(B, b_blk)

    # ---- Operand preparation (one-time layout plumbing in the wrapper) ----
    x = x.astype(jnp.float32)
    sel = head_selection.astype(jnp.int32)
    prob = head_probabilities.astype(jnp.float32)
    if B_p != B:
        pad = B_p - B
        x = jnp.pad(x, ((0, pad), (0, 0), (0, 0)))
        sel = jnp.pad(sel, ((0, pad), (0, 0)))        # bank 0, masked by prob=0
        prob = jnp.pad(prob, ((0, pad), (0, 0)))      # must stay zero

    # Flatten bank tables for the fused matmul: W2[k*d_head + d, m] = W[k,d,m],
    # pad d_model, then pre-slice into N tiles so the kernel indexes the
    # leading axis only.
    W2 = W.astype(compute_dtype).reshape(k_dim, d_model)
    bias2 = bias.astype(jnp.float32)
    if d_model_p != d_model:
        W2 = jnp.pad(W2, ((0, 0), (0, d_model_p - d_model)))
        bias2 = jnp.pad(bias2, ((0, 0), (0, d_model_p - d_model)))
    W2 = W2.reshape(k_dim, n_blocks, tile_n).transpose(1, 0, 2)
    bias2 = bias2.reshape(num_banks, n_blocks, tile_n).transpose(1, 0, 2)

    # ---- VMEM budget estimate (resident tables + double-buffered blocks) ----
    w_itemsize = jnp.dtype(compute_dtype).itemsize
    est = (_vreg_padded_bytes((n_blocks, k_dim, tile_n), w_itemsize)
           + _vreg_padded_bytes((n_blocks, num_banks, tile_n), 4)
           + 2 * _vreg_padded_bytes((b_blk, H, d_head), 4)
           + 2 * 2 * _vreg_padded_bytes((b_blk, H), 4)
           + 2 * _vreg_padded_bytes((b_blk, tile_n), 4)
           + _vreg_padded_bytes((b_blk, k_dim), w_itemsize)
           + _vreg_padded_bytes((b_blk, num_banks), 4))
    vmem_limit = int(est * 1.3) + (4 << 20)
    vmem_limit = max(vmem_limit, 32 << 20)
    vmem_limit = min(vmem_limit, 100 << 20)

    kernel = functools.partial(_banked_merge_kernel, num_banks=num_banks)

    out = pl.pallas_call(
        kernel,
        out_shape=jax.ShapeDtypeStruct((B_p, d_model_p), jnp.float32),
        grid_spec=pltpu.PrefetchScalarGridSpec(
            num_scalar_prefetch=0,
            grid=(B_p // b_blk, n_blocks),
            in_specs=[
                # Per-batch-block operands (auto double-buffered pipeline).
                pl.BlockSpec((b_blk, H, d_head), lambda i, j: (i, 0, 0)),
                pl.BlockSpec((b_blk, H), lambda i, j: (i, 0)),
                pl.BlockSpec((b_blk, H), lambda i, j: (i, 0)),
                # Whole bank tables: VMEM-resident, single-buffered, fetched
                # from HBM exactly once.
                pl.BlockSpec(memory_space=pltpu.MemorySpace.VMEM),
                pl.BlockSpec(memory_space=pltpu.MemorySpace.VMEM),
            ],
            out_specs=pl.BlockSpec((b_blk, tile_n), lambda i, j: (i, j)),
            scratch_shapes=[
                pltpu.VMEM((b_blk, k_dim), compute_dtype),      # Y
                pltpu.VMEM((b_blk, num_banks), jnp.float32),    # coeffs
            ],
        ),
        compiler_params=pltpu.CompilerParams(
            dimension_semantics=("parallel", "arbitrary"),
            vmem_limit_bytes=vmem_limit,
        ),
    )(x, sel, prob, W2, bias2)

    return out[:B, :d_model]


def _reference(x, sel, prob, W, bias):
    proj = jnp.einsum('bhd,bhdm->bhm', x, W[sel]) + bias[sel]
    return jnp.einsum('bhm,bh->bm', proj, prob)


if __name__ == "__main__":
    # Small, module-consistent shapes.
    B, H, d_head, d_model = 2, 8, 32, 64
    num_banks = H   # BankedLinear(d_head, d_model, num_heads)

    key = jax.random.PRNGKey(0)
    k_x, k_w, k_b, k_sel, k_p = jax.random.split(key, 5)

    x = jax.random.normal(k_x, (B, H, d_head), dtype=jnp.float32)
    W = (jax.random.normal(k_w, (num_banks, d_head, d_model), dtype=jnp.float32)
         / jnp.sqrt(d_head))
    bias = 0.1 * jax.random.normal(k_b, (num_banks, d_model), dtype=jnp.float32)

    head_selection = jax.random.randint(k_sel, (B, H), 0, num_banks,
                                        dtype=jnp.int32)
    head_probabilities = jax.nn.softmax(
        jax.random.normal(k_p, (B, H), dtype=jnp.float32), axis=-1)

    ref = _reference(x, head_selection, head_probabilities, W, bias)

    # Exact-numerics path (f32 weights): tight tolerance.
    out_f32 = banked_merge_heads(x, head_selection, head_probabilities, W,
                                 bias, compute_dtype=jnp.float32)
    out_f32 = jax.block_until_ready(out_f32)
    assert out_f32.shape == (B, d_model) and out_f32.dtype == jnp.float32
    assert jnp.allclose(out_f32, ref, atol=1e-3, rtol=1e-3), (
        f"f32 path max abs err = {jnp.max(jnp.abs(out_f32 - ref))}")

    # Default fast path (bf16 weights / LHS, f32 accumulation): looser tol.
    out_bf16 = banked_merge_heads(x, head_selection, head_probabilities, W,
                                  bias)
    out_bf16 = jax.block_until_ready(out_bf16)
    assert out_bf16.shape == (B, d_model) and out_bf16.dtype == jnp.float32
    assert jnp.allclose(out_bf16, ref, atol=2e-2, rtol=2e-2), (
        f"bf16 path max abs err = {jnp.max(jnp.abs(out_bf16 - ref))}")

    print("KERNEL_OK")
</pallas_src>

<mosaic_0001>
module attributes {stable_mosaic.version = 11 : i64} {
  func.func @_banked_merge_kernel(%arg0: i32, %arg1: i32, %arg2: memref<8x8x32xf32, #tpu.memory_space<vmem>>, %arg3: memref<8x8xi32, #tpu.memory_space<vmem>>, %arg4: memref<8x8xf32, #tpu.memory_space<vmem>>, %arg5: memref<1x256x128xf32, #tpu.memory_space<vmem>>, %arg6: memref<1x8x128xf32, #tpu.memory_space<vmem>>, %arg7: memref<8x128xf32, #tpu.memory_space<vmem>>, %arg8: memref<8x256xf32, #tpu.memory_space<vmem>>, %arg9: memref<8x8xf32, #tpu.memory_space<vmem>>) attributes {dimension_semantics = [#tpu.dimension_semantics<parallel>, #tpu.dimension_semantics<arbitrary>], iteration_bounds = array<i64: 1, 1>, scalar_prefetch = 0 : i64, scratch_operands = 2 : i64, tpu.core_type = #tpu.core_type<tc>, window_params = [{transform_indices = @transform_0, window_bounds = array<i64: 8, 8, 32>}, {transform_indices = @transform_1, window_bounds = array<i64: 8, 8>}, {transform_indices = @transform_2, window_bounds = array<i64: 8, 8>}, {pipeline_mode = #tpu.pipeline_mode<synchronous>, transform_indices = @transform_3, window_bounds = array<i64: 1, 256, 128>}, {pipeline_mode = #tpu.pipeline_mode<synchronous>, transform_indices = @transform_4, window_bounds = array<i64: 1, 8, 128>}, {transform_indices = @transform_5, window_bounds = array<i64: 8, 128>}]} {
    %c0_i32 = arith.constant 0 : i32
    %0 = arith.cmpi eq, %arg1, %c0_i32 : i32
    %1 = arith.extui %0 : i1 to i32
    %c0_i32_0 = arith.constant 0 : i32
    %2 = arith.cmpi ne, %1, %c0_i32_0 : i32
    scf.if %2 {
      %c0_11 = arith.constant 0 : index
      %c0_12 = arith.constant 0 : index
      %c0_13 = arith.constant 0 : index
      %15 = vector.load %arg2[%c0_11, %c0_12, %c0_13] : memref<8x8x32xf32, #tpu.memory_space<vmem>>, vector<8x8x32xf32>
      %c0_14 = arith.constant 0 : index
      %c0_15 = arith.constant 0 : index
      %16 = vector.load %arg3[%c0_14, %c0_15] : memref<8x8xi32, #tpu.memory_space<vmem>>, vector<8x8xi32>
      %c0_16 = arith.constant 0 : index
      %c0_17 = arith.constant 0 : index
      %17 = vector.load %arg4[%c0_16, %c0_17] : memref<8x8xf32, #tpu.memory_space<vmem>>, vector<8x8xf32>
      %c0_i32_18 = arith.constant 0 : i32
      %18 = vector.broadcast %c0_i32_18 : i32 to vector<8x8xi32>
      %19 = arith.cmpi eq, %16, %18 : vector<8x8xi32>
      %cst_19 = arith.constant 0.000000e+00 : f32
      %20 = vector.broadcast %cst_19 : f32 to vector<8x8xf32>
      %21 = arith.select %19, %17, %20 : vector<8x8xi1>, vector<8x8xf32>
      %22 = vector.shape_cast %21 : vector<8x8xf32> to vector<8x8x1xf32>
      %23 = vector.broadcast %22 : vector<8x8x1xf32> to vector<8x8x32xf32>
      %24 = arith.mulf %23, %15 : vector<8x8x32xf32>
      %cst_20 = arith.constant dense<0.000000e+00> : vector<8x32xf32>
      %25 = vector.multi_reduction <add>, %24, %cst_20 [1] : vector<8x8x32xf32> to vector<8x32xf32>
      %cst_21 = arith.constant dense<0.000000e+00> : vector<8xf32>
      %26 = vector.multi_reduction <add>, %21, %cst_21 [1] : vector<8x8xf32> to vector<8xf32>
      %27 = vector.shape_cast %26 : vector<8xf32> to vector<8x1xf32>
      %c1_i32 = arith.constant 1 : i32
      %28 = vector.broadcast %c1_i32 : i32 to vector<8x8xi32>
      %29 = arith.cmpi eq, %16, %28 : vector<8x8xi32>
      %cst_22 = arith.constant 0.000000e+00 : f32
      %30 = vector.broadcast %cst_22 : f32 to vector<8x8xf32>
      %31 = arith.select %29, %17, %30 : vector<8x8xi1>, vector<8x8xf32>
      %32 = vector.shape_cast %31 : vector<8x8xf32> to vector<8x8x1xf32>
      %33 = vector.broadcast %32 : vector<8x8x1xf32> to vector<8x8x32xf32>
      %34 = arith.mulf %33, %15 : vector<8x8x32xf32>
      %cst_23 = arith.constant dense<0.000000e+00> : vector<8x32xf32>
      %35 = vector.multi_reduction <add>, %34, %cst_23 [1] : vector<8x8x32xf32> to vector<8x32xf32>
      %cst_24 = arith.constant dense<0.000000e+00> : vector<8xf32>
      %36 = vector.multi_reduction <add>, %31, %cst_24 [1] : vector<8x8xf32> to vector<8xf32>
      %37 = vector.shape_cast %36 : vector<8xf32> to vector<8x1xf32>
      %c2_i32 = arith.constant 2 : i32
      %38 = vector.broadcast %c2_i32 : i32 to vector<8x8xi32>
      %39 = arith.cmpi eq, %16, %38 : vector<8x8xi32>
      %cst_25 = arith.constant 0.000000e+00 : f32
      %40 = vector.broadcast %cst_25 : f32 to vector<8x8xf32>
      %41 = arith.select %39, %17, %40 : vector<8x8xi1>, vector<8x8xf32>
      %42 = vector.shape_cast %41 : vector<8x8xf32> to vector<8x8x1xf32>
      %43 = vector.broadcast %42 : vector<8x8x1xf32> to vector<8x8x32xf32>
      %44 = arith.mulf %43, %15 : vector<8x8x32xf32>
      %cst_26 = arith.constant dense<0.000000e+00> : vector<8x32xf32>
      %45 = vector.multi_reduction <add>, %44, %cst_26 [1] : vector<8x8x32xf32> to vector<8x32xf32>
      %cst_27 = arith.constant dense<0.000000e+00> : vector<8xf32>
      %46 = vector.multi_reduction <add>, %41, %cst_27 [1] : vector<8x8xf32> to vector<8xf32>
      %47 = vector.shape_cast %46 : vector<8xf32> to vector<8x1xf32>
      %c3_i32 = arith.constant 3 : i32
      %48 = vector.broadcast %c3_i32 : i32 to vector<8x8xi32>
      %49 = arith.cmpi eq, %16, %48 : vector<8x8xi32>
      %cst_28 = arith.constant 0.000000e+00 : f32
      %50 = vector.broadcast %cst_28 : f32 to vector<8x8xf32>
      %51 = arith.select %49, %17, %50 : vector<8x8xi1>, vector<8x8xf32>
      %52 = vector.shape_cast %51 : vector<8x8xf32> to vector<8x8x1xf32>
      %53 = vector.broadcast %52 : vector<8x8x1xf32> to vector<8x8x32xf32>
      %54 = arith.mulf %53, %15 : vector<8x8x32xf32>
      %cst_29 = arith.constant dense<0.000000e+00> : vector<8x32xf32>
      %55 = vector.multi_reduction <add>, %54, %cst_29 [1] : vector<8x8x32xf32> to vector<8x32xf32>
      %cst_30 = arith.constant dense<0.000000e+00> : vector<8xf32>
      %56 = vector.multi_reduction <add>, %51, %cst_30 [1] : vector<8x8xf32> to vector<8xf32>
      %57 = vector.shape_cast %56 : vector<8xf32> to vector<8x1xf32>
      %c4_i32 = arith.constant 4 : i32
      %58 = vector.broadcast %c4_i32 : i32 to vector<8x8xi32>
      %59 = arith.cmpi eq, %16, %58 : vector<8x8xi32>
      %cst_31 = arith.constant 0.000000e+00 : f32
      %60 = vector.broadcast %cst_31 : f32 to vector<8x8xf32>
      %61 = arith.select %59, %17, %60 : vector<8x8xi1>, vector<8x8xf32>
      %62 = vector.shape_cast %61 : vector<8x8xf32> to vector<8x8x1xf32>
      %63 = vector.broadcast %62 : vector<8x8x1xf32> to vector<8x8x32xf32>
      %64 = arith.mulf %63, %15 : vector<8x8x32xf32>
      %cst_32 = arith.constant dense<0.000000e+00> : vector<8x32xf32>
      %65 = vector.multi_reduction <add>, %64, %cst_32 [1] : vector<8x8x32xf32> to vector<8x32xf32>
      %cst_33 = arith.constant dense<0.000000e+00> : vector<8xf32>
      %66 = vector.multi_reduction <add>, %61, %cst_33 [1] : vector<8x8xf32> to vector<8xf32>
      %67 = vector.shape_cast %66 : vector<8xf32> to vector<8x1xf32>
      %c5_i32 = arith.constant 5 : i32
      %68 = vector.broadcast %c5_i32 : i32 to vector<8x8xi32>
      %69 = arith.cmpi eq, %16, %68 : vector<8x8xi32>
      %cst_34 = arith.constant 0.000000e+00 : f32
      %70 = vector.broadcast %cst_34 : f32 to vector<8x8xf32>
      %71 = arith.select %69, %17, %70 : vector<8x8xi1>, vector<8x8xf32>
      %72 = vector.shape_cast %71 : vector<8x8xf32> to vector<8x8x1xf32>
      %73 = vector.broadcast %72 : vector<8x8x1xf32> to vector<8x8x32xf32>
      %74 = arith.mulf %73, %15 : vector<8x8x32xf32>
      %cst_35 = arith.constant dense<0.000000e+00> : vector<8x32xf32>
      %75 = vector.multi_reduction <add>, %74, %cst_35 [1] : vector<8x8x32xf32> to vector<8x32xf32>
      %cst_36 = arith.constant dense<0.000000e+00> : vector<8xf32>
      %76 = vector.multi_reduction <add>, %71, %cst_36 [1] : vector<8x8xf32> to vector<8xf32>
      %77 = vector.shape_cast %76 : vector<8xf32> to vector<8x1xf32>
      %c6_i32 = arith.constant 6 : i32
      %78 = vector.broadcast %c6_i32 : i32 to vector<8x8xi32>
      %79 = arith.cmpi eq, %16, %78 : vector<8x8xi32>
      %cst_37 = arith.constant 0.000000e+00 : f32
      %80 = vector.broadcast %cst_37 : f32 to vector<8x8xf32>
      %81 = arith.select %79, %17, %80 : vector<8x8xi1>, vector<8x8xf32>
      %82 = vector.shape_cast %81 : vector<8x8xf32> to vector<8x8x1xf32>
      %83 = vector.broadcast %82 : vector<8x8x1xf32> to vector<8x8x32xf32>
      %84 = arith.mulf %83, %15 : vector<8x8x32xf32>
      %cst_38 = arith.constant dense<0.000000e+00> : vector<8x32xf32>
      %85 = vector.multi_reduction <add>, %84, %cst_38 [1] : vector<8x8x32xf32> to vector<8x32xf32>
      %cst_39 = arith.constant dense<0.000000e+00> : vector<8xf32>
      %86 = vector.multi_reduction <add>, %81, %cst_39 [1] : vector<8x8xf32> to vector<8xf32>
      %87 = vector.shape_cast %86 : vector<8xf32> to vector<8x1xf32>
      %c7_i32 = arith.constant 7 : i32
      %88 = vector.broadcast %c7_i32 : i32 to vector<8x8xi32>
      %89 = arith.cmpi eq, %16, %88 : vector<8x8xi32>
      %cst_40 = arith.constant 0.000000e+00 : f32
      %90 = vector.broadcast %cst_40 : f32 to vector<8x8xf32>
      %91 = arith.select %89, %17, %90 : vector<8x8xi1>, vector<8x8xf32>
      %92 = vector.shape_cast %91 : vector<8x8xf32> to vector<8x8x1xf32>
      %93 = vector.broadcast %92 : vector<8x8x1xf32> to vector<8x8x32xf32>
      %94 = arith.mulf %93, %15 : vector<8x8x32xf32>
      %cst_41 = arith.constant dense<0.000000e+00> : vector<8x32xf32>
      %95 = vector.multi_reduction <add>, %94, %cst_41 [1] : vector<8x8x32xf32> to vector<8x32xf32>
      %cst_42 = arith.constant dense<0.000000e+00> : vector<8xf32>
      %96 = vector.multi_reduction <add>, %91, %cst_42 [1] : vector<8x8xf32> to vector<8xf32>
      %97 = vector.shape_cast %96 : vector<8xf32> to vector<8x1xf32>
      %98 = tpu.concatenate %25, %35, %45, %55, %65, %75, %85, %95 in 1 : vector<8x32xf32>, vector<8x32xf32>, vector<8x32xf32>, vector<8x32xf32>, vector<8x32xf32>, vector<8x32xf32>, vector<8x32xf32>, vector<8x32xf32> -> vector<8x256xf32>
      %c0_43 = arith.constant 0 : index
      %c0_44 = arith.constant 0 : index
      %99 = vector.load %arg8[%c0_43, %c0_44] : memref<8x256xf32, #tpu.memory_space<vmem>>, vector<8x256xf32>
      tpu.vector_store %arg8[%c0_43, %c0_44], %98 {strides = array<i32>} : memref<8x256xf32, #tpu.memory_space<vmem>>, vector<8x256xf32>,
      %100 = tpu.concatenate %27, %37, %47, %57, %67, %77, %87, %97 in 1 : vector<8x1xf32>, vector<8x1xf32>, vector<8x1xf32>, vector<8x1xf32>, vector<8x1xf32>, vector<8x1xf32>, vector<8x1xf32>, vector<8x1xf32> -> vector<8x8xf32>
      %c0_45 = arith.constant 0 : index
      %c0_46 = arith.constant 0 : index
      %101 = vector.load %arg9[%c0_45, %c0_46] : memref<8x8xf32, #tpu.memory_space<vmem>>, vector<8x8xf32>
      tpu.vector_store %arg9[%c0_45, %c0_46], %100 {strides = array<i32>} : memref<8x8xf32, #tpu.memory_space<vmem>>, vector<8x8xf32>,
    } else {
    }
    %3 = arith.index_cast %arg1 : i32 to index
    %c0 = arith.constant 0 : index
    %c0_1 = arith.constant 0 : index
    %4 = vector.load %arg5[%3, %c0, %c0_1] : memref<1x256x128xf32, #tpu.memory_space<vmem>>, vector<1x256x128xf32>
    %5 = vector.shape_cast %4 : vector<1x256x128xf32> to vector<256x128xf32>
    %6 = arith.index_cast %arg1 : i32 to index
    %c0_2 = arith.constant 0 : index
    %c0_3 = arith.constant 0 : index
    %7 = vector.load %arg6[%6, %c0_2, %c0_3] : memref<1x8x128xf32, #tpu.memory_space<vmem>>, vector<1x8x128xf32>
    %8 = vector.shape_cast %7 : vector<1x8x128xf32> to vector<8x128xf32>
    %c0_4 = arith.constant 0 : index
    %c0_5 = arith.constant 0 : index
    %9 = vector.load %arg8[%c0_4, %c0_5] : memref<8x256xf32, #tpu.memory_space<vmem>>, vector<8x256xf32>
    %cst = arith.constant dense<0.000000e+00> : vector<8x128xf32>
    %10 = tpu.matmul %9, %5, %cst {dimension_numbers = #tpu.dot_dimension_numbers<[1], [0], [0], [1], [0, 0, 1, 1], [], []>} : vector<8x256xf32>, vector<256x128xf32>, vector<8x128xf32> -> vector<8x128xf32>
    %c0_6 = arith.constant 0 : index
    %c0_7 = arith.constant 0 : index
    %11 = vector.load %arg9[%c0_6, %c0_7] : memref<8x8xf32, #tpu.memory_space<vmem>>, vector<8x8xf32>
    %cst_8 = arith.constant dense<0.000000e+00> : vector<8x128xf32>
    %12 = tpu.matmul %11, %8, %cst_8 {dimension_numbers = #tpu.dot_dimension_numbers<[1], [0], [0], [1], [0, 0, 1, 1], [], []>} : vector<8x8xf32>, vector<8x128xf32>, vector<8x128xf32> -> vector<8x128xf32>
    %13 = arith.addf %10, %12 : vector<8x128xf32>
    %c0_9 = arith.constant 0 : index
    %c0_10 = arith.constant 0 : index
    %14 = vector.load %arg7[%c0_9, %c0_10] : memref<8x128xf32, #tpu.memory_space<vmem>>, vector<8x128xf32>
    tpu.vector_store %arg7[%c0_9, %c0_10], %13 {strides = array<i32>} : memref<8x128xf32, #tpu.memory_space<vmem>>, vector<8x128xf32>,
    return
  }
  func.func @transform_0(%arg0: i32, %arg1: i32) -> (i32, i32, i32) {
    %c0_i32 = arith.constant 0 : i32
    %c0_i32_0 = arith.constant 0 : i32
    %c0_i32_1 = arith.constant 0 : i32
    return %arg0, %c0_i32, %c0_i32_0 : i32, i32, i32
  }
  func.func @transform_1(%arg0: i32, %arg1: i32) -> (i32, i32) {
    %c0_i32 = arith.constant 0 : i32
    %c0_i32_0 = arith.constant 0 : i32
    return %arg0, %c0_i32 : i32, i32
  }
  func.func @transform_2(%arg0: i32, %arg1: i32) -> (i32, i32) {
    %c0_i32 = arith.constant 0 : i32
    %c0_i32_0 = arith.constant 0 : i32
    return %arg0, %c0_i32 : i32, i32
  }
  func.func @transform_3(%arg0: i32, %arg1: i32) -> (i32, i32, i32) {
    %c0_i32 = arith.constant 0 : i32
    %c0_i32_0 = arith.constant 0 : i32
    %c0_i32_1 = arith.constant 0 : i32
    %c0_i32_2 = arith.constant 0 : i32
    return %c0_i32, %c0_i32_0, %c0_i32_1 : i32, i32, i32
  }
  func.func @transform_4(%arg0: i32, %arg1: i32) -> (i32, i32, i32) {
    %c0_i32 = arith.constant 0 : i32
    %c0_i32_0 = arith.constant 0 : i32
    %c0_i32_1 = arith.constant 0 : i32
    %c0_i32_2 = arith.constant 0 : i32
    return %c0_i32, %c0_i32_0, %c0_i32_1 : i32, i32, i32
  }
  func.func @transform_5(%arg0: i32, %arg1: i32) -> (i32, i32) {
    %c0_i32 = arith.constant 0 : i32
    return %arg0, %arg1 : i32, i32
  }
}

</mosaic_0001>

<llo_original>
// kernel: tpu_custom_call.1
$region0: #{tpu_custom_call.1}
  #allocation0 [shape = 'u32[]', space=smem, size = 0x4, offset = 0x4, fixed_abs, tag = 'smem constant byte address 0x4 - core index']
  #allocation1 [shape = 'u32[144,128]{1,0:T(1,128)}', space=vmem, size = 0x12000, scoped, tag = 'internal scratch']
  #allocation2 [shape = 'f32[8,256]{1,0:T(8,128)}', space=vmem, size = 0x2000, scoped, tag = 'scratch operand']
  #allocation3 [shape = 'f32[8,8]{1,0:T(8,128)}', space=vmem, size = 0x1000, scoped, tag = 'scratch operand']
  %s0 = inlined_call_operand.hbm [shape: f32[8,8,32], index: 0, kind: input, shape index: {}]
  %s1 = inlined_call_operand.hbm [shape: s32[8,8], index: 1, kind: input, shape index: {}]
  %s2 = inlined_call_operand.hbm [shape: f32[8,8], index: 2, kind: input, shape index: {}]
  %s3 = inlined_call_operand.hbm [shape: f32[1,256,128], index: 3, kind: input, shape index: {}]
  %s4 = inlined_call_operand.vmem [shape: f32[1,8,128], index: 4, kind: input, shape index: {}]
  %s5 = inlined_call_operand.hbm [shape: f32[8,128], index: 5, kind: output, shape index: {}]
  %s6 = sld [smem:[#allocation0]]
  $region50: #{tpu_custom_call.1} parent=0
    _
  %s8 = ssub.s32 1, %s6
  %s9 = scalar_select 0, %s8, %s6
  $region1: #{tpu_custom_call.1} parent=0
    #allocation4 [shape = 'u8[32768]{0}', space=vmem, size = 0x8000, scoped, tag = 'input window, operand 0, single buffered']
    #allocation5 [shape = 's32[1]{0}', space=sflag, size = 0x4, scoped, tag = 'scoped memory for tpu_custom_call.1']
    #allocation6 [shape = 's32[1]{0}', space=sflag, size = 0x4, scoped, tag = 'scoped memory for tpu_custom_call.1']
    #allocation7 [shape = 'u8[4096]{0}', space=vmem, size = 0x1000, scoped, tag = 'input window, operand 1, single buffered']
    #allocation8 [shape = 's32[1]{0}', space=sflag, size = 0x4, scoped, tag = 'scoped memory for tpu_custom_call.1']
    #allocation9 [shape = 'u8[4096]{0}', space=vmem, size = 0x1000, scoped, tag = 'input window, operand 2, single buffered']
    #allocation10 [shape = 'u8[131072]{0}', space=vmem, size = 0x20000, scoped, tag = 'input window, operand 3, single buffered']
    #allocation11 [shape = 's32[1]{0}', space=sflag, size = 0x4, scoped, tag = 'scoped memory for tpu_custom_call.1']
    #allocation12 [shape = 'u8[4096]{0}', space=vmem, size = 0x1000, scoped, tag = 'output window, operand 0, single buffered']
    %10 = vsyncpa [#allocation5], 0
    %11 = vsyncpa [#allocation8], 0
    %12 = vsyncpa [#allocation11], 0
    %13 = vsyncpa [#allocation6], 0
    // Predicated region
    $region2: #{tpu_custom_call.1} parent=1 // pred_check
      _
    $region3: #{tpu_custom_call.1} parent=1 // pred_check_branch
      %15 = sbr.rel (0) target = $region5
    $region4: #{tpu_custom_call.1} parent=1 // pred_region
      %s17 = ssub.s32 1024, 1024
      %18 = vsyncadd [#allocation5], %s17
      %s19 = sshll.u32 [#allocation4], 4
      %s20 = int_to_ptr.vmem [resolvable:$true] %s19
      %25 = dma.hbm_to_vmem [thread:$0]  %s0, 1024, %s20, [#allocation5], 128, 128, 8
    $region5: #{tpu_custom_call.1} parent=1 // pred_fallthru
      _
    // Predicated region
    $region6: #{tpu_custom_call.1} parent=1 // pred_check
      _
    $region7: #{tpu_custom_call.1} parent=1 // pred_check_branch
      %27 = sbr.rel (0) target = $region9
    $region8: #{tpu_custom_call.1} parent=1 // pred_region
      %s29 = ssub.s32 128, 128
      %30 = vsyncadd [#allocation8], %s29
      %s32 = sshll.u32 [#allocation7], 4
      %s33 = int_to_ptr.vmem [resolvable:$true] %s32
      %35 = dma.hbm_to_vmem [thread:$0]  %s1, 128, %s33, [#allocation8]
    $region9: #{tpu_custom_call.1} parent=1 // pred_fallthru
      _
    // Predicated region
    $region10: #{tpu_custom_call.1} parent=1 // pred_check
      _
    $region11: #{tpu_custom_call.1} parent=1 // pred_check_branch
      %37 = sbr.rel (0) target = $region13
    $region12: #{tpu_custom_call.1} parent=1 // pred_region
      %s39 = ssub.s32 128, 128
      %40 = vsyncadd [#allocation8], %s39
      %s42 = sshll.u32 [#allocation9], 4
      %s43 = int_to_ptr.vmem [resolvable:$true] %s42
      %45 = dma.hbm_to_vmem [thread:$0]  %s2, 128, %s43, [#allocation8]
    $region13: #{tpu_custom_call.1} parent=1 // pred_fallthru
      _
    // Predicated region
    $region14: #{tpu_custom_call.1} parent=1 // pred_check
      _
    $region15: #{tpu_custom_call.1} parent=1 // pred_check_branch
      %47 = sbr.rel (0) target = $region17
    $region16: #{tpu_custom_call.1} parent=1 // pred_region
      %s49 = ssub.s32 4096, 4096
      %50 = vsyncadd [#allocation11], %s49
      %s51 = sshll.u32 [#allocation10], 4
      %s52 = int_to_ptr.vmem [resolvable:$true] %s51
      %57 = dma.hbm_to_vmem [thread:$0]  %s3, 4096, %s52, [#allocation11], 128, 128, 8
    $region17: #{tpu_custom_call.1} parent=1 // pred_fallthru
      _
    // Predicated region
    $region18: #{tpu_custom_call.1} parent=1 // pred_check
      _
    $region19: #{tpu_custom_call.1} parent=1 // pred_check_branch
      %59 = sbr.rel (0) target = $region21
    $region20: #{tpu_custom_call.1} parent=1 // pred_region
      _
    $region21: #{tpu_custom_call.1} parent=1 // pred_fallthru
      _
    // Predicated region
    $region22: #{tpu_custom_call.1} parent=1 // pred_check
      _
    $region23: #{tpu_custom_call.1} parent=1 // pred_check_branch
      %61 = sbr.rel (0) target = $region25
    $region24: #{tpu_custom_call.1} parent=1 // pred_region
      %62 = dma.done [#allocation5], 1024
    $region25: #{tpu_custom_call.1} parent=1 // pred_fallthru
      _
    // Predicated region
    $region26: #{tpu_custom_call.1} parent=1 // pred_check
      _
    $region27: #{tpu_custom_call.1} parent=1 // pred_check_branch
      %64 = sbr.rel (0) target = $region29
    $region28: #{tpu_custom_call.1} parent=1 // pred_region
      %65 = dma.done [#allocation8], 128
    $region29: #{tpu_custom_call.1} parent=1 // pred_fallthru
      _
    // Predicated region
    $region30: #{tpu_custom_call.1} parent=1 // pred_check
      _
    $region31: #{tpu_custom_call.1} parent=1 // pred_check_branch
      %67 = sbr.rel (0) target = $region33
    $region32: #{tpu_custom_call.1} parent=1 // pred_region
      %68 = dma.done [#allocation8], 128
    $region33: #{tpu_custom_call.1} parent=1 // pred_fallthru
      _
    // Predicated region
    $region34: #{tpu_custom_call.1} parent=1 // pred_check
      _
    $region35: #{tpu_custom_call.1} parent=1 // pred_check_branch
      %70 = sbr.rel (0) target = $region37
    $region36: #{tpu_custom_call.1} parent=1 // pred_region
      %71 = dma.done [#allocation11], 4096
    $region37: #{tpu_custom_call.1} parent=1 // pred_fallthru
      _
    %p72 = scmp.eq.s32.totalorder 0, 0
    // Predicated region
    $region38: #{tpu_custom_call.1} parent=1 // pred_check
      %p73 = pneg %p72
    $region39: #{tpu_custom_call.1} parent=1 // pred_check_branch
      %75 = sbr.rel (%p73) target = $region41
    $region40: #{tpu_custom_call.1} parent=1 // pred_region
      %v76 = vld [vmem:[#allocation4] sm:$0xff]
      %v77 = vld [vmem:[#allocation4 + $0x8] sm:$0xff]
      %v78 = vld [vmem:[#allocation4 + $0x10] sm:$0xff]
      %v79 = vld [vmem:[#allocation4 + $0x18] sm:$0xff]
      %v80 = vld [vmem:[#allocation4 + $0x20] sm:$0xff]
      %v81 = vld [vmem:[#allocation4 + $0x28] sm:$0xff]
      %v82 = vld [vmem:[#allocation4 + $0x30] sm:$0xff]
      %v83 = vld [vmem:[#allocation4 + $0x38] sm:$0xff]
      %v84 = vld [vmem:[#allocation7] sm:$0xff]
      %v85 = vld [vmem:[#allocation9] sm:$0xff]
      %vm86 = vcmp.eq.s32.totalorder %v84, 0
      %v87 = vsel %vm86, %v85, 0.0
      %v88 = vlaneseq
      %v89 = vshrl.u32 %v88, 7
      %v90 = vsub.s32 0, %v89
      %v91 = vrot.slane %v87, %v90
      %93 = vbcast.lane.b32.xlu0 %v91, 256
      %v94 = vpop.permute.xlu0 %93
      %v95 = vlaneseq
      %v96 = vshrl.u32 %v95, 7
      %v97 = vsub.s32 1, %v96
      %v98 = vrot.slane %v87, %v97
      %100 = vbcast.lane.b32.xlu0 %v98, 256
      %v101 = vpop.permute.xlu0 %100
      %v102 = vlaneseq
      %v103 = vshrl.u32 %v102, 7
      %v104 = vsub.s32 2, %v103
      %v105 = vrot.slane %v87, %v104
      %107 = vbcast.lane.b32.xlu0 %v105, 256
      %v108 = vpop.permute.xlu0 %107
      %v109 = vlaneseq
      %v110 = vshrl.u32 %v109, 7
      %v111 = vsub.s32 3, %v110
      %v112 = vrot.slane %v87, %v111
      %114 = vbcast.lane.b32.xlu0 %v112, 256
      %v115 = vpop.permute.xlu0 %114
      %v116 = vlaneseq
      %v117 = vshrl.u32 %v116, 7
      %v118 = vsub.s32 4, %v117
      %v119 = vrot.slane %v87, %v118
      %121 = vbcast.lane.b32.xlu0 %v119, 256
      %v122 = vpop.permute.xlu0 %121
      %v123 = vlaneseq
      %v124 = vshrl.u32 %v123, 7
      %v125 = vsub.s32 5, %v124
      %v126 = vrot.slane %v87, %v125
      %128 = vbcast.lane.b32.xlu0 %v126, 256
      %v129 = vpop.permute.xlu0 %128
      %v130 = vlaneseq
      %v131 = vshrl.u32 %v130, 7
      %v132 = vsub.s32 6, %v131
      %v133 = vrot.slane %v87, %v132
      %135 = vbcast.lane.b32.xlu0 %v133, 256
      %v136 = vpop.permute.xlu0 %135
      %v137 = vlaneseq
      %v138 = vshrl.u32 %v137, 7
      %v139 = vsub.s32 7, %v138
      %v140 = vrot.slane %v87, %v139
      %142 = vbcast.lane.b32.xlu0 %v140, 256
      %v143 = vpop.permute.xlu0 %142
      %v144 = vmul.f32 %v94, %v76
      %v145 = vmul.f32 %v101, %v77
      %v146 = vmul.f32 %v108, %v78
      %v147 = vmul.f32 %v115, %v79
      %v148 = vmul.f32 %v122, %v80
      %v149 = vmul.f32 %v129, %v81
      %v150 = vmul.f32 %v136, %v82
      %v151 = vmul.f32 %v143, %v83
      %vm152 = vcmask 261120
      %v153 = vsel %vm152, %v144, 0.0
      %v154 = vrot.slane %v153, 4
      %v155 = vadd.f32 %v153, %v154
      %v156 = vrot.slane %v155, 2
      %v157 = vadd.f32 %v155, %v156
      %v158 = vrot.slane %v157, 1
      %v159 = vadd.f32 %v157, %v158
      %v160 = vsel %vm152, %v145, 0.0
      %v161 = vrot.slane %v160, 4
      %v162 = vadd.f32 %v160, %v161
      %v163 = vrot.slane %v162, 2
      %v164 = vadd.f32 %v162, %v163
      %v165 = vrot.slane %v164, 1
      %v166 = vadd.f32 %v164, %v165
      %v167 = vsel %vm152, %v146, 0.0
      %v168 = vrot.slane %v167, 4
      %v169 = vadd.f32 %v167, %v168
      %v170 = vrot.slane %v169, 2
      %v171 = vadd.f32 %v169, %v170
      %v172 = vrot.slane %v171, 1
      %v173 = vadd.f32 %v171, %v172
      %v174 = vsel %vm152, %v147, 0.0
      %v175 = vrot.slane %v174, 4
      %v176 = vadd.f32 %v174, %v175
      %v177 = vrot.slane %v176, 2
      %v178 = vadd.f32 %v176, %v177
      %v179 = vrot.slane %v178, 1
      %v180 = vadd.f32 %v178, %v179
      %v181 = vsel %vm152, %v148, 0.0
      %v182 = vrot.slane %v181, 4
      %v183 = vadd.f32 %v181, %v182
      %v184 = vrot.slane %v183, 2
      %v185 = vadd.f32 %v183, %v184
      %v186 = vrot.slane %v185, 1
      %v187 = vadd.f32 %v185, %v186
      %v188 = vsel %vm152, %v149, 0.0
      %v189 = vrot.slane %v188, 4
      %v190 = vadd.f32 %v188, %v189
      %v191 = vrot.slane %v190, 2
      %v192 = vadd.f32 %v190, %v191
      %v193 = vrot.slane %v192, 1
      %v194 = vadd.f32 %v192, %v193
      %v195 = vsel %vm152, %v150, 0.0
      %v196 = vrot.slane %v195, 4
      %v197 = vadd.f32 %v195, %v196
      %v198 = vrot.slane %v197, 2
      %v199 = vadd.f32 %v197, %v198
      %v200 = vrot.slane %v199, 1
      %v201 = vadd.f32 %v199, %v200
      %v202 = vsel %vm152, %v151, 0.0
      %v203 = vrot.slane %v202, 4
      %v204 = vadd.f32 %v202, %v203
      %v205 = vrot.slane %v204, 2
      %v206 = vadd.f32 %v204, %v205
      %v207 = vrot.slane %v206, 1
      %v208 = vadd.f32 %v206, %v207
      %vm209 = vcmask 64512
      %v210 = vsel %vm209, %v87, 0.0
      %211 = vadd.xlane.f32.xlu0 %v210
      %v212 = vpop.xlane.xlu0 %211
      %vm213 = vcmp.eq.s32.totalorder %v84, 1
      %v214 = vsel %vm213, %v85, 0.0
      %v215 = vlaneseq
      %v216 = vshrl.u32 %v215, 7
      %v217 = vsub.s32 0, %v216
      %v218 = vrot.slane %v214, %v217
      %220 = vbcast.lane.b32.xlu0 %v218, 256
      %v221 = vpop.permute.xlu0 %220
      %v222 = vlaneseq
      %v223 = vshrl.u32 %v222, 7
      %v224 = vsub.s32 1, %v223
      %v225 = vrot.slane %v214, %v224
      %227 = vbcast.lane.b32.xlu0 %v225, 256
      %v228 = vpop.permute.xlu0 %227
      %v229 = vlaneseq
      %v230 = vshrl.u32 %v229, 7
      %v231 = vsub.s32 2, %v230
      %v232 = vrot.slane %v214, %v231
      %234 = vbcast.lane.b32.xlu0 %v232, 256
      %v235 = vpop.permute.xlu0 %234
      %v236 = vlaneseq
      %v237 = vshrl.u32 %v236, 7
      %v238 = vsub.s32 3, %v237
      %v239 = vrot.slane %v214, %v238
      %241 = vbcast.lane.b32.xlu0 %v239, 256
      %v242 = vpop.permute.xlu0 %241
      %v243 = vlaneseq
      %v244 = vshrl.u32 %v243, 7
      %v245 = vsub.s32 4, %v244
      %v246 = vrot.slane %v214, %v245
      %248 = vbcast.lane.b32.xlu0 %v246, 256
      %v249 = vpop.permute.xlu0 %248
      %v250 = vlaneseq
      %v251 = vshrl.u32 %v250, 7
      %v252 = vsub.s32 5, %v251
      %v253 = vrot.slane %v214, %v252
      %255 = vbcast.lane.b32.xlu0 %v253, 256
      %v256 = vpop.permute.xlu0 %255
      %v257 = vlaneseq
      %v258 = vshrl.u32 %v257, 7
      %v259 = vsub.s32 6, %v258
      %v260 = vrot.slane %v214, %v259
      %262 = vbcast.lane.b32.xlu0 %v260, 256
      %v263 = vpop.permute.xlu0 %262
      %v264 = vlaneseq
      %v265 = vshrl.u32 %v264, 7
      %v266 = vsub.s32 7, %v265
      %v267 = vrot.slane %v214, %v266
      %269 = vbcast.lane.b32.xlu0 %v267, 256
      %v270 = vpop.permute.xlu0 %269
      %v271 = vmul.f32 %v221, %v76
      %v272 = vmul.f32 %v228, %v77
      %v273 = vmul.f32 %v235, %v78
      %v274 = vmul.f32 %v242, %v79
      %v275 = vmul.f32 %v249, %v80
      %v276 = vmul.f32 %v256, %v81
      %v277 = vmul.f32 %v263, %v82
      %v278 = vmul.f32 %v270, %v83
      %v279 = vsel %vm152, %v271, 0.0
      %v280 = vrot.slane %v279, 4
      %v281 = vadd.f32 %v279, %v280
      %v282 = vrot.slane %v281, 2
      %v283 = vadd.f32 %v281, %v282
      %v284 = vrot.slane %v283, 1
      %v285 = vadd.f32 %v283, %v284
      %v286 = vsel %vm152, %v272, 0.0
      %v287 = vrot.slane %v286, 4
      %v288 = vadd.f32 %v286, %v287
      %v289 = vrot.slane %v288, 2
      %v290 = vadd.f32 %v288, %v289
      %v291 = vrot.slane %v290, 1
      %v292 = vadd.f32 %v290, %v291
      %v293 = vsel %vm152, %v273, 0.0
      %v294 = vrot.slane %v293, 4
      %v295 = vadd.f32 %v293, %v294
      %v296 = vrot.slane %v295, 2
      %v297 = vadd.f32 %v295, %v296
      %v298 = vrot.slane %v297, 1
      %v299 = vadd.f32 %v297, %v298
      %v300 = vsel %vm152, %v274, 0.0
      %v301 = vrot.slane %v300, 4
      %v302 = vadd.f32 %v300, %v301
      %v303 = vrot.slane %v302, 2
      %v304 = vadd.f32 %v302, %v303
      %v305 = vrot.slane %v304, 1
      %v306 = vadd.f32 %v304, %v305
      %v307 = vsel %vm152, %v275, 0.0
      %v308 = vrot.slane %v307, 4
      %v309 = vadd.f32 %v307, %v308
      %v310 = vrot.slane %v309, 2
      %v311 = vadd.f32 %v309, %v310
      %v312 = vrot.slane %v311, 1
      %v313 = vadd.f32 %v311, %v312
      %v314 = vsel %vm152, %v276, 0.0
      %v315 = vrot.slane %v314, 4
      %v316 = vadd.f32 %v314, %v315
      %v317 = vrot.slane %v316, 2
      %v318 = vadd.f32 %v316, %v317
      %v319 = vrot.slane %v318, 1
      %v320 = vadd.f32 %v318, %v319
      %v321 = vsel %vm152, %v277, 0.0
      %v322 = vrot.slane %v321, 4
      %v323 = vadd.f32 %v321, %v322
      %v324 = vrot.slane %v323, 2
      %v325 = vadd.f32 %v323, %v324
      %v326 = vrot.slane %v325, 1
      %v327 = vadd.f32 %v325, %v326
      %v328 = vsel %vm152, %v278, 0.0
      %v329 = vrot.slane %v328, 4
      %v330 = vadd.f32 %v328, %v329
      %v331 = vrot.slane %v330, 2
      %v332 = vadd.f32 %v330, %v331
      %v333 = vrot.slane %v332, 1
      %v334 = vadd.f32 %v332, %v333
      %v335 = vsel %vm209, %v214, 0.0
      %336 = vadd.xlane.f32.xlu0 %v335
      %v337 = vpop.xlane.xlu0 %336
      %vm338 = vcmp.eq.s32.totalorder %v84, 2
      %v339 = vsel %vm338, %v85, 0.0
      %v340 = vlaneseq
      %v341 = vshrl.u32 %v340, 7
      %v342 = vsub.s32 0, %v341
      %v343 = vrot.slane %v339, %v342
      %345 = vbcast.lane.b32.xlu0 %v343, 256
      %v346 = vpop.permute.xlu0 %345
      %v347 = vlaneseq
      %v348 = vshrl.u32 %v347, 7
      %v349 = vsub.s32 1, %v348
      %v350 = vrot.slane %v339, %v349
      %352 = vbcast.lane.b32.xlu0 %v350, 256
      %v353 = vpop.permute.xlu0 %352
      %v354 = vlaneseq
      %v355 = vshrl.u32 %v354, 7
      %v356 = vsub.s32 2, %v355
      %v357 = vrot.slane %v339, %v356
      %359 = vbcast.lane.b32.xlu0 %v357, 256
      %v360 = vpop.permute.xlu0 %359
      %v361 = vlaneseq
      %v362 = vshrl.u32 %v361, 7
      %v363 = vsub.s32 3, %v362
      %v364 = vrot.slane %v339, %v363
      %366 = vbcast.lane.b32.xlu0 %v364, 256
      %v367 = vpop.permute.xlu0 %366
      %v368 = vlaneseq
      %v369 = vshrl.u32 %v368, 7
      %v370 = vsub.s32 4, %v369
      %v371 = vrot.slane %v339, %v370
      %373 = vbcast.lane.b32.xlu0 %v371, 256
      %v374 = vpop.permute.xlu0 %373
      %v375 = vlaneseq
      %v376 = vshrl.u32 %v375, 7
      %v377 = vsub.s32 5, %v376
      %v378 = vrot.slane %v339, %v377
      %380 = vbcast.lane.b32.xlu0 %v378, 256
      %v381 = vpop.permute.xlu0 %380
      %v382 = vlaneseq
      %v383 = vshrl.u32 %v382, 7
      %v384 = vsub.s32 6, %v383
      %v385 = vrot.slane %v339, %v384
      %387 = vbcast.lane.b32.xlu0 %v385, 256
      %v388 = vpop.permute.xlu0 %387
      %v389 = vlaneseq
      %v390 = vshrl.u32 %v389, 7
      %v391 = vsub.s32 7, %v390
      %v392 = vrot.slane %v339, %v391
      %394 = vbcast.lane.b32.xlu0 %v392, 256
      %v395 = vpop.permute.xlu0 %394
      %v396 = vmul.f32 %v346, %v76
      %v397 = vmul.f32 %v353, %v77
      %v398 = vmul.f32 %v360, %v78
      %v399 = vmul.f32 %v367, %v79
      %v400 = vmul.f32 %v374, %v80
      %v401 = vmul.f32 %v381, %v81
      %v402 = vmul.f32 %v388, %v82
      %v403 = vmul.f32 %v395, %v83
      %v404 = vsel %vm152, %v396, 0.0
      %v405 = vrot.slane %v404, 4
      %v406 = vadd.f32 %v404, %v405
      %v407 = vrot.slane %v406, 2
      %v408 = vadd.f32 %v406, %v407
      %v409 = vrot.slane %v408, 1
      %v410 = vadd.f32 %v408, %v409
      %v411 = vsel %vm152, %v397, 0.0
      %v412 = vrot.slane %v411, 4
      %v413 = vadd.f32 %v411, %v412
      %v414 = vrot.slane %v413, 2
      %v415 = vadd.f32 %v413, %v414
      %v416 = vrot.slane %v415, 1
      %v417 = vadd.f32 %v415, %v416
      %v418 = vsel %vm152, %v398, 0.0
      %v419 = vrot.slane %v418, 4
      %v420 = vadd.f32 %v418, %v419
      %v421 = vrot.slane %v420, 2
      %v422 = vadd.f32 %v420, %v421
      %v423 = vrot.slane %v422, 1
      %v424 = vadd.f32 %v422, %v423
      %v425 = vsel %vm152, %v399, 0.0
      %v426 = vrot.slane %v425, 4
      %v427 = vadd.f32 %v425, %v426
      %v428 = vrot.slane %v427, 2
      %v429 = vadd.f32 %v427, %v428
      %v430 = vrot.slane %v429, 1
      %v431 = vadd.f32 %v429, %v430
      %v432 = vsel %vm152, %v400, 0.0
      %v433 = vrot.slane %v432, 4
      %v434 = vadd.f32 %v432, %v433
      %v435 = vrot.slane %v434, 2
      %v436 = vadd.f32 %v434, %v435
      %v437 = vrot.slane %v436, 1
      %v438 = vadd.f32 %v436, %v437
      %v439 = vsel %vm152, %v401, 0.0
      %v440 = vrot.slane %v439, 4
      %v441 = vadd.f32 %v439, %v440
      %v442 = vrot.slane %v441, 2
      %v443 = vadd.f32 %v441, %v442
      %v444 = vrot.slane %v443, 1
      %v445 = vadd.f32 %v443, %v444
      %v446 = vsel %vm152, %v402, 0.0
      %v447 = vrot.slane %v446, 4
      %v448 = vadd.f32 %v446, %v447
      %v449 = vrot.slane %v448, 2
      %v450 = vadd.f32 %v448, %v449
      %v451 = vrot.slane %v450, 1
      %v452 = vadd.f32 %v450, %v451
      %v453 = vsel %vm152, %v403, 0.0
      %v454 = vrot.slane %v453, 4
      %v455 = vadd.f32 %v453, %v454
      %v456 = vrot.slane %v455, 2
      %v457 = vadd.f32 %v455, %v456
      %v458 = vrot.slane %v457, 1
      %v459 = vadd.f32 %v457, %v458
      %v460 = vsel %vm209, %v339, 0.0
      %461 = vadd.xlane.f32.xlu0 %v460
      %v462 = vpop.xlane.xlu0 %461
      %vm463 = vcmp.eq.s32.totalorder %v84, 3
      %v464 = vsel %vm463, %v85, 0.0
      %v465 = vlaneseq
      %v466 = vshrl.u32 %v465, 7
      %v467 = vsub.s32 0, %v466
      %v468 = vrot.slane %v464, %v467
      %470 = vbcast.lane.b32.xlu0 %v468, 256
      %v471 = vpop.permute.xlu0 %470
      %v472 = vlaneseq
      %v473 = vshrl.u32 %v472, 7
      %v474 = vsub.s32 1, %v473
      %v475 = vrot.slane %v464, %v474
      %477 = vbcast.lane.b32.xlu0 %v475, 256
      %v478 = vpop.permute.xlu0 %477
      %v479 = vlaneseq
      %v480 = vshrl.u32 %v479, 7
      %v481 = vsub.s32 2, %v480
      %v482 = vrot.slane %v464, %v481
      %484 = vbcast.lane.b32.xlu0 %v482, 256
      %v485 = vpop.permute.xlu0 %484
      %v486 = vlaneseq
      %v487 = vshrl.u32 %v486, 7
      %v488 = vsub.s32 3, %v487
      %v489 = vrot.slane %v464, %v488
      %491 = vbcast.lane.b32.xlu0 %v489, 256
      %v492 = vpop.permute.xlu0 %491
      %v493 = vlaneseq
      %v494 = vshrl.u32 %v493, 7
      %v495 = vsub.s32 4, %v494
      %v496 = vrot.slane %v464, %v495
      %498 = vbcast.lane.b32.xlu0 %v496, 256
      %v499 = vpop.permute.xlu0 %498
      %v500 = vlaneseq
      %v501 = vshrl.u32 %v500, 7
      %v502 = vsub.s32 5, %v501
      %v503 = vrot.slane %v464, %v502
      %505 = vbcast.lane.b32.xlu0 %v503, 256
      %v506 = vpop.permute.xlu0 %505
      %v507 = vlaneseq
      %v508 = vshrl.u32 %v507, 7
      %v509 = vsub.s32 6, %v508
      %v510 = vrot.slane %v464, %v509
      %512 = vbcast.lane.b32.xlu0 %v510, 256
      %v513 = vpop.permute.xlu0 %512
      %v514 = vlaneseq
      %v515 = vshrl.u32 %v514, 7
      %v516 = vsub.s32 7, %v515
      %v517 = vrot.slane %v464, %v516
      %519 = vbcast.lane.b32.xlu0 %v517, 256
      %v520 = vpop.permute.xlu0 %519
      %v521 = vmul.f32 %v471, %v76
      %v522 = vmul.f32 %v478, %v77
      %v523 = vmul.f32 %v485, %v78
      %v524 = vmul.f32 %v492, %v79
      %v525 = vmul.f32 %v499, %v80
      %v526 = vmul.f32 %v506, %v81
      %v527 = vmul.f32 %v513, %v82
      %v528 = vmul.f32 %v520, %v83
      %v529 = vsel %vm152, %v521, 0.0
      %v530 = vrot.slane %v529, 4
      %v531 = vadd.f32 %v529, %v530
      %v532 = vrot.slane %v531, 2
      %v533 = vadd.f32 %v531, %v532
      %v534 = vrot.slane %v533, 1
      %v535 = vadd.f32 %v533, %v534
      %v536 = vsel %vm152, %v522, 0.0
      %v537 = vrot.slane %v536, 4
      %v538 = vadd.f32 %v536, %v537
      %v539 = vrot.slane %v538, 2
      %v540 = vadd.f32 %v538, %v539
      %v541 = vrot.slane %v540, 1
      %v542 = vadd.f32 %v540, %v541
      %v543 = vsel %vm152, %v523, 0.0
      %v544 = vrot.slane %v543, 4
      %v545 = vadd.f32 %v543, %v544
      %v546 = vrot.slane %v545, 2
      %v547 = vadd.f32 %v545, %v546
      %v548 = vrot.slane %v547, 1
      %v549 = vadd.f32 %v547, %v548
      %v550 = vsel %vm152, %v524, 0.0
      %v551 = vrot.slane %v550, 4
      %v552 = vadd.f32 %v550, %v551
      %v553 = vrot.slane %v552, 2
      %v554 = vadd.f32 %v552, %v553
      %v555 = vrot.slane %v554, 1
      %v556 = vadd.f32 %v554, %v555
      %v557 = vsel %vm152, %v525, 0.0
      %v558 = vrot.slane %v557, 4
      %v559 = vadd.f32 %v557, %v558
      %v560 = vrot.slane %v559, 2
      %v561 = vadd.f32 %v559, %v560
      %v562 = vrot.slane %v561, 1
      %v563 = vadd.f32 %v561, %v562
      %v564 = vsel %vm152, %v526, 0.0
      %v565 = vrot.slane %v564, 4
      %v566 = vadd.f32 %v564, %v565
      %v567 = vrot.slane %v566, 2
      %v568 = vadd.f32 %v566, %v567
      %v569 = vrot.slane %v568, 1
      %v570 = vadd.f32 %v568, %v569
      %v571 = vsel %vm152, %v527, 0.0
      %v572 = vrot.slane %v571, 4
      %v573 = vadd.f32 %v571, %v572
      %v574 = vrot.slane %v573, 2
      %v575 = vadd.f32 %v573, %v574
      %v576 = vrot.slane %v575, 1
      %v577 = vadd.f32 %v575, %v576
      %v578 = vsel %vm152, %v528, 0.0
      %v579 = vrot.slane %v578, 4
      %v580 = vadd.f32 %v578, %v579
      %v581 = vrot.slane %v580, 2
      %v582 = vadd.f32 %v580, %v581
      %v583 = vrot.slane %v582, 1
      %v584 = vadd.f32 %v582, %v583
      %v585 = vsel %vm209, %v464, 0.0
      %586 = vadd.xlane.f32.xlu0 %v585
      %v587 = vpop.xlane.xlu0 %586
      %vm588 = vcmp.eq.s32.totalorder %v84, 4
      %v589 = vsel %vm588, %v85, 0.0
      %v590 = vlaneseq
      %v591 = vshrl.u32 %v590, 7
      %v592 = vsub.s32 0, %v591
      %v593 = vrot.slane %v589, %v592
      %595 = vbcast.lane.b32.xlu0 %v593, 256
      %v596 = vpop.permute.xlu0 %595
      %v597 = vlaneseq
      %v598 = vshrl.u32 %v597, 7
      %v599 = vsub.s32 1, %v598
      %v600 = vrot.slane %v589, %v599
      %602 = vbcast.lane.b32.xlu0 %v600, 256
      %v603 = vpop.permute.xlu0 %602
      %v604 = vlaneseq
      %v605 = vshrl.u32 %v604, 7
      %v606 = vsub.s32 2, %v605
      %v607 = vrot.slane %v589, %v606
      %609 = vbcast.lane.b32.xlu0 %v607, 256
      %v610 = vpop.permute.xlu0 %609
      %v611 = vlaneseq
      %v612 = vshrl.u32 %v611, 7
      %v613 = vsub.s32 3, %v612
      %v614 = vrot.slane %v589, %v613
      %616 = vbcast.lane.b32.xlu0 %v614, 256
      %v617 = vpop.permute.xlu0 %616
      %v618 = vlaneseq
      %v619 = vshrl.u32 %v618, 7
      %v620 = vsub.s32 4, %v619
      %v621 = vrot.slane %v589, %v620
      %623 = vbcast.lane.b32.xlu0 %v621, 256
      %v624 = vpop.permute.xlu0 %623
      %v625 = vlaneseq
      %v626 = vshrl.u32 %v625, 7
      %v627 = vsub.s32 5, %v626
      %v628 = vrot.slane %v589, %v627
      %630 = vbcast.lane.b32.xlu0 %v628, 256
      %v631 = vpop.permute.xlu0 %630
      %v632 = vlaneseq
      %v633 = vshrl.u32 %v632, 7
      %v634 = vsub.s32 6, %v633
      %v635 = vrot.slane %v589, %v634
      %637 = vbcast.lane.b32.xlu0 %v635, 256
      %v638 = vpop.permute.xlu0 %637
      %v639 = vlaneseq
      %v640 = vshrl.u32 %v639, 7
      %v641 = vsub.s32 7, %v640
      %v642 = vrot.slane %v589, %v641
      %644 = vbcast.lane.b32.xlu0 %v642, 256
      %v645 = vpop.permute.xlu0 %644
      %v646 = vmul.f32 %v596, %v76
      %v647 = vmul.f32 %v603, %v77
      %v648 = vmul.f32 %v610, %v78
      %v649 = vmul.f32 %v617, %v79
      %v650 = vmul.f32 %v624, %v80
      %v651 = vmul.f32 %v631, %v81
      %v652 = vmul.f32 %v638, %v82
      %v653 = vmul.f32 %v645, %v83
      %v654 = vsel %vm152, %v646, 0.0
      %v655 = vrot.slane %v654, 4
      %v656 = vadd.f32 %v654, %v655
      %v657 = vrot.slane %v656, 2
      %v658 = vadd.f32 %v656, %v657
      %v659 = vrot.slane %v658, 1
      %v660 = vadd.f32 %v658, %v659
      %v661 = vsel %vm152, %v647, 0.0
      %v662 = vrot.slane %v661, 4
      %v663 = vadd.f32 %v661, %v662
      %v664 = vrot.slane %v663, 2
      %v665 = vadd.f32 %v663, %v664
      %v666 = vrot.slane %v665, 1
      %v667 = vadd.f32 %v665, %v666
      %v668 = vsel %vm152, %v648, 0.0
      %v669 = vrot.slane %v668, 4
      %v670 = vadd.f32 %v668, %v669
      %v671 = vrot.slane %v670, 2
      %v672 = vadd.f32 %v670, %v671
      %v673 = vrot.slane %v672, 1
      %v674 = vadd.f32 %v672, %v673
      %v675 = vsel %vm152, %v649, 0.0
      %v676 = vrot.slane %v675, 4
      %v677 = vadd.f32 %v675, %v676
      %v678 = vrot.slane %v677, 2
      %v679 = vadd.f32 %v677, %v678
      %v680 = vrot.slane %v679, 1
      %v681 = vadd.f32 %v679, %v680
      %v682 = vsel %vm152, %v650, 0.0
      %v683 = vrot.slane %v682, 4
      %v684 = vadd.f32 %v682, %v683
      %v685 = vrot.slane %v684, 2
      %v686 = vadd.f32 %v684, %v685
      %v687 = vrot.slane %v686, 1
      %v688 = vadd.f32 %v686, %v687
      %v689 = vsel %vm152, %v651, 0.0
      %v690 = vrot.slane %v689, 4
      %v691 = vadd.f32 %v689, %v690
      %v692 = vrot.slane %v691, 2
      %v693 = vadd.f32 %v691, %v692
      %v694 = vrot.slane %v693, 1
      %v695 = vadd.f32 %v693, %v694
      %v696 = vsel %vm152, %v652, 0.0
      %v697 = vrot.slane %v696, 4
      %v698 = vadd.f32 %v696, %v697
      %v699 = vrot.slane %v698, 2
      %v700 = vadd.f32 %v698, %v699
      %v701 = vrot.slane %v700, 1
      %v702 = vadd.f32 %v700, %v701
      %v703 = vsel %vm152, %v653, 0.0
      %v704 = vrot.slane %v703, 4
      %v705 = vadd.f32 %v703, %v704
      %v706 = vrot.slane %v705, 2
      %v707 = vadd.f32 %v705, %v706
      %v708 = vrot.slane %v707, 1
      %v709 = vadd.f32 %v707, %v708
      %v710 = vsel %vm209, %v589, 0.0
      %711 = vadd.xlane.f32.xlu0 %v710
      %v712 = vpop.xlane.xlu0 %711
      %vm713 = vcmp.eq.s32.totalorder %v84, 5
      %v714 = vsel %vm713, %v85, 0.0
      %v715 = vlaneseq
      %v716 = vshrl.u32 %v715, 7
      %v717 = vsub.s32 0, %v716
      %v718 = vrot.slane %v714, %v717
      %720 = vbcast.lane.b32.xlu0 %v718, 256
      %v721 = vpop.permute.xlu0 %720
      %v722 = vlaneseq
      %v723 = vshrl.u32 %v722, 7
      %v724 = vsub.s32 1, %v723
      %v725 = vrot.slane %v714, %v724
      %727 = vbcast.lane.b32.xlu0 %v725, 256
      %v728 = vpop.permute.xlu0 %727
      %v729 = vlaneseq
      %v730 = vshrl.u32 %v729, 7
      %v731 = vsub.s32 2, %v730
      %v732 = vrot.slane %v714, %v731
      %734 = vbcast.lane.b32.xlu0 %v732, 256
      %v735 = vpop.permute.xlu0 %734
      %v736 = vlaneseq
      %v737 = vshrl.u32 %v736, 7
      %v738 = vsub.s32 3, %v737
      %v739 = vrot.slane %v714, %v738
      %741 = vbcast.lane.b32.xlu0 %v739, 256
      %v742 = vpop.permute.xlu0 %741
      %v743 = vlaneseq
      %v744 = vshrl.u32 %v743, 7
      %v745 = vsub.s32 4, %v744
      %v746 = vrot.slane %v714, %v745
      %748 = vbcast.lane.b32.xlu0 %v746, 256
      %v749 = vpop.permute.xlu0 %748
      %v750 = vlaneseq
      %v751 = vshrl.u32 %v750, 7
      %v752 = vsub.s32 5, %v751
      %v753 = vrot.slane %v714, %v752
      %755 = vbcast.lane.b32.xlu0 %v753, 256
      %v756 = vpop.permute.xlu0 %755
      %v757 = vlaneseq
      %v758 = vshrl.u32 %v757, 7
      %v759 = vsub.s32 6, %v758
      %v760 = vrot.slane %v714, %v759
      %762 = vbcast.lane.b32.xlu0 %v760, 256
      %v763 = vpop.permute.xlu0 %762
      %v764 = vlaneseq
      %v765 = vshrl.u32 %v764, 7
      %v766 = vsub.s32 7, %v765
      %v767 = vrot.slane %v714, %v766
      %769 = vbcast.lane.b32.xlu0 %v767, 256
      %v770 = vpop.permute.xlu0 %769
      %v771 = vmul.f32 %v721, %v76
      %v772 = vmul.f32 %v728, %v77
      %v773 = vmul.f32 %v735, %v78
      %v774 = vmul.f32 %v742, %v79
      %v775 = vmul.f32 %v749, %v80
      %v776 = vmul.f32 %v756, %v81
      %v777 = vmul.f32 %v763, %v82
      %v778 = vmul.f32 %v770, %v83
      %v779 = vsel %vm152, %v771, 0.0
      %v780 = vrot.slane %v779, 4
      %v781 = vadd.f32 %v779, %v780
      %v782 = vrot.slane %v781, 2
      %v783 = vadd.f32 %v781, %v782
      %v784 = vrot.slane %v783, 1
      %v785 = vadd.f32 %v783, %v784
      %v786 = vsel %vm152, %v772, 0.0
      %v787 = vrot.slane %v786, 4
      %v788 = vadd.f32 %v786, %v787
      %v789 = vrot.slane %v788, 2
      %v790 = vadd.f32 %v788, %v789
      %v791 = vrot.slane %v790, 1
      %v792 = vadd.f32 %v790, %v791
      %v793 = vsel %vm152, %v773, 0.0
      %v794 = vrot.slane %v793, 4
      %v795 = vadd.f32 %v793, %v794
      %v796 = vrot.slane %v795, 2
      %v797 = vadd.f32 %v795, %v796
      %v798 = vrot.slane %v797, 1
      %v799 = vadd.f32 %v797, %v798
      %v800 = vsel %vm152, %v774, 0.0
      %v801 = vrot.slane %v800, 4
      %v802 = vadd.f32 %v800, %v801
      %v803 = vrot.slane %v802, 2
      %v804 = vadd.f32 %v802, %v803
      %v805 = vrot.slane %v804, 1
      %v806 = vadd.f32 %v804, %v805
      %v807 = vsel %vm152, %v775, 0.0
      %v808 = vrot.slane %v807, 4
      %v809 = vadd.f32 %v807, %v808
      %v810 = vrot.slane %v809, 2
      %v811 = vadd.f32 %v809, %v810
      %v812 = vrot.slane %v811, 1
      %v813 = vadd.f32 %v811, %v812
      %v814 = vsel %vm152, %v776, 0.0
      %v815 = vrot.slane %v814, 4
      %v816 = vadd.f32 %v814, %v815
      %v817 = vrot.slane %v816, 2
      %v818 = vadd.f32 %v816, %v817
      %v819 = vrot.slane %v818, 1
      %v820 = vadd.f32 %v818, %v819
      %v821 = vsel %vm152, %v777, 0.0
      %v822 = vrot.slane %v821, 4
      %v823 = vadd.f32 %v821, %v822
      %v824 = vrot.slane %v823, 2
      %v825 = vadd.f32 %v823, %v824
      %v826 = vrot.slane %v825, 1
      %v827 = vadd.f32 %v825, %v826
      %v828 = vsel %vm152, %v778, 0.0
      %v829 = vrot.slane %v828, 4
      %v830 = vadd.f32 %v828, %v829
      %v831 = vrot.slane %v830, 2
      %v832 = vadd.f32 %v830, %v831
      %v833 = vrot.slane %v832, 1
      %v834 = vadd.f32 %v832, %v833
      %v835 = vsel %vm209, %v714, 0.0
      %836 = vadd.xlane.f32.xlu0 %v835
      %v837 = vpop.xlane.xlu0 %836
      %vm838 = vcmp.eq.s32.totalorder %v84, 6
      %v839 = vsel %vm838, %v85, 0.0
      %v840 = vlaneseq
      %v841 = vshrl.u32 %v840, 7
      %v842 = vsub.s32 0, %v841
      %v843 = vrot.slane %v839, %v842
      %845 = vbcast.lane.b32.xlu0 %v843, 256
      %v846 = vpop.permute.xlu0 %845
      %v847 = vlaneseq
      %v848 = vshrl.u32 %v847, 7
      %v849 = vsub.s32 1, %v848
      %v850 = vrot.slane %v839, %v849
      %852 = vbcast.lane.b32.xlu0 %v850, 256
      %v853 = vpop.permute.xlu0 %852
      %v854 = vlaneseq
      %v855 = vshrl.u32 %v854, 7
      %v856 = vsub.s32 2, %v855
      %v857 = vrot.slane %v839, %v856
      %859 = vbcast.lane.b32.xlu0 %v857, 256
      %v860 = vpop.permute.xlu0 %859
      %v861 = vlaneseq
      %v862 = vshrl.u32 %v861, 7
      %v863 = vsub.s32 3, %v862
      %v864 = vrot.slane %v839, %v863
      %866 = vbcast.lane.b32.xlu0 %v864, 256
      %v867 = vpop.permute.xlu0 %866
      %v868 = vlaneseq
      %v869 = vshrl.u32 %v868, 7
      %v870 = vsub.s32 4, %v869
      %v871 = vrot.slane %v839, %v870
      %873 = vbcast.lane.b32.xlu0 %v871, 256
      %v874 = vpop.permute.xlu0 %873
      %v875 = vlaneseq
      %v876 = vshrl.u32 %v875, 7
      %v877 = vsub.s32 5, %v876
      %v878 = vrot.slane %v839, %v877
      %880 = vbcast.lane.b32.xlu0 %v878, 256
      %v881 = vpop.permute.xlu0 %880
      %v882 = vlaneseq
      %v883 = vshrl.u32 %v882, 7
      %v884 = vsub.s32 6, %v883
      %v885 = vrot.slane %v839, %v884
      %887 = vbcast.lane.b32.xlu0 %v885, 256
      %v888 = vpop.permute.xlu0 %887
      %v889 = vlaneseq
      %v890 = vshrl.u32 %v889, 7
      %v891 = vsub.s32 7, %v890
      %v892 = vrot.slane %v839, %v891
      %894 = vbcast.lane.b32.xlu0 %v892, 256
      %v895 = vpop.permute.xlu0 %894
      %v896 = vmul.f32 %v846, %v76
      %v897 = vmul.f32 %v853, %v77
      %v898 = vmul.f32 %v860, %v78
      %v899 = vmul.f32 %v867, %v79
      %v900 = vmul.f32 %v874, %v80
      %v901 = vmul.f32 %v881, %v81
      %v902 = vmul.f32 %v888, %v82
      %v903 = vmul.f32 %v895, %v83
      %v904 = vsel %vm152, %v896, 0.0
      %v905 = vrot.slane %v904, 4
      %v906 = vadd.f32 %v904, %v905
      %v907 = vrot.slane %v906, 2
      %v908 = vadd.f32 %v906, %v907
      %v909 = vrot.slane %v908, 1
      %v910 = vadd.f32 %v908, %v909
      %v911 = vsel %vm152, %v897, 0.0
      %v912 = vrot.slane %v911, 4
      %v913 = vadd.f32 %v911, %v912
      %v914 = vrot.slane %v913, 2
      %v915 = vadd.f32 %v913, %v914
      %v916 = vrot.slane %v915, 1
      %v917 = vadd.f32 %v915, %v916
      %v918 = vsel %vm152, %v898, 0.0
      %v919 = vrot.slane %v918, 4
      %v920 = vadd.f32 %v918, %v919
      %v921 = vrot.slane %v920, 2
      %v922 = vadd.f32 %v920, %v921
      %v923 = vrot.slane %v922, 1
      %v924 = vadd.f32 %v922, %v923
      %v925 = vsel %vm152, %v899, 0.0
      %v926 = vrot.slane %v925, 4
      %v927 = vadd.f32 %v925, %v926
      %v928 = vrot.slane %v927, 2
      %v929 = vadd.f32 %v927, %v928
      %v930 = vrot.slane %v929, 1
      %v931 = vadd.f32 %v929, %v930
      %v932 = vsel %vm152, %v900, 0.0
      %v933 = vrot.slane %v932, 4
      %v934 = vadd.f32 %v932, %v933
      %v935 = vrot.slane %v934, 2
      %v936 = vadd.f32 %v934, %v935
      %v937 = vrot.slane %v936, 1
      %v938 = vadd.f32 %v936, %v937
      %v939 = vsel %vm152, %v901, 0.0
      %v940 = vrot.slane %v939, 4
      %v941 = vadd.f32 %v939, %v940
      %v942 = vrot.slane %v941, 2
      %v943 = vadd.f32 %v941, %v942
      %v944 = vrot.slane %v943, 1
      %v945 = vadd.f32 %v943, %v944
      %v946 = vsel %vm152, %v902, 0.0
      %v947 = vrot.slane %v946, 4
      %v948 = vadd.f32 %v946, %v947
      %v949 = vrot.slane %v948, 2
      %v950 = vadd.f32 %v948, %v949
      %v951 = vrot.slane %v950, 1
      %v952 = vadd.f32 %v950, %v951
      %v953 = vsel %vm152, %v903, 0.0
      %v954 = vrot.slane %v953, 4
      %v955 = vadd.f32 %v953, %v954
      %v956 = vrot.slane %v955, 2
      %v957 = vadd.f32 %v955, %v956
      %v958 = vrot.slane %v957, 1
      %v959 = vadd.f32 %v957, %v958
      %v960 = vsel %vm209, %v839, 0.0
      %961 = vadd.xlane.f32.xlu0 %v960
      %v962 = vpop.xlane.xlu0 %961
      %vm963 = vcmp.eq.s32.totalorder %v84, 7
      %v964 = vsel %vm963, %v85, 0.0
      %v965 = vlaneseq
      %v966 = vshrl.u32 %v965, 7
      %v967 = vsub.s32 0, %v966
      %v968 = vrot.slane %v964, %v967
      %970 = vbcast.lane.b32.xlu0 %v968, 256
      %v971 = vpop.permute.xlu0 %970
      %v972 = vlaneseq
      %v973 = vshrl.u32 %v972, 7
      %v974 = vsub.s32 1, %v973
      %v975 = vrot.slane %v964, %v974
      %977 = vbcast.lane.b32.xlu0 %v975, 256
      %v978 = vpop.permute.xlu0 %977
      %v979 = vlaneseq
      %v980 = vshrl.u32 %v979, 7
      %v981 = vsub.s32 2, %v980
      %v982 = vrot.slane %v964, %v981
      %984 = vbcast.lane.b32.xlu0 %v982, 256
      %v985 = vpop.permute.xlu0 %984
      %v986 = vlaneseq
      %v987 = vshrl.u32 %v986, 7
      %v988 = vsub.s32 3, %v987
      %v989 = vrot.slane %v964, %v988
      %991 = vbcast.lane.b32.xlu0 %v989, 256
      %v992 = vpop.permute.xlu0 %991
      %v993 = vlaneseq
      %v994 = vshrl.u32 %v993, 7
      %v995 = vsub.s32 4, %v994
      %v996 = vrot.slane %v964, %v995
      %998 = vbcast.lane.b32.xlu0 %v996, 256
      %v999 = vpop.permute.xlu0 %998
      %v1000 = vlaneseq
      %v1001 = vshrl.u32 %v1000, 7
      %v1002 = vsub.s32 5, %v1001
      %v1003 = vrot.slane %v964, %v1002
      %1005 = vbcast.lane.b32.xlu0 %v1003, 256
      %v1006 = vpop.permute.xlu0 %1005
      %v1007 = vlaneseq
      %v1008 = vshrl.u32 %v1007, 7
      %v1009 = vsub.s32 6, %v1008
      %v1010 = vrot.slane %v964, %v1009
      %1012 = vbcast.lane.b32.xlu0 %v1010, 256
      %v1013 = vpop.permute.xlu0 %1012
      %v1014 = vlaneseq
      %v1015 = vshrl.u32 %v1014, 7
      %v1016 = vsub.s32 7, %v1015
      %v1017 = vrot.slane %v964, %v1016
      %1019 = vbcast.lane.b32.xlu0 %v1017, 256
      %v1020 = vpop.permute.xlu0 %1019
      %v1021 = vmul.f32 %v971, %v76
      %v1022 = vmul.f32 %v978, %v77
      %v1023 = vmul.f32 %v985, %v78
      %v1024 = vmul.f32 %v992, %v79
      %v1025 = vmul.f32 %v999, %v80
      %v1026 = vmul.f32 %v1006, %v81
      %v1027 = vmul.f32 %v1013, %v82
      %v1028 = vmul.f32 %v1020, %v83
      %v1029 = vsel %vm152, %v1021, 0.0
      %v1030 = vrot.slane %v1029, 4
      %v1031 = vadd.f32 %v1029, %v1030
      %v1032 = vrot.slane %v1031, 2
      %v1033 = vadd.f32 %v1031, %v1032
      %v1034 = vrot.slane %v1033, 1
      %v1035 = vadd.f32 %v1033, %v1034
      %v1036 = vsel %vm152, %v1022, 0.0
      %v1037 = vrot.slane %v1036, 4
      %v1038 = vadd.f32 %v1036, %v1037
      %v1039 = vrot.slane %v1038, 2
      %v1040 = vadd.f32 %v1038, %v1039
      %v1041 = vrot.slane %v1040, 1
      %v1042 = vadd.f32 %v1040, %v1041
      %v1043 = vsel %vm152, %v1023, 0.0
      %v1044 = vrot.slane %v1043, 4
      %v1045 = vadd.f32 %v1043, %v1044
      %v1046 = vrot.slane %v1045, 2
      %v1047 = vadd.f32 %v1045, %v1046
      %v1048 = vrot.slane %v1047, 1
      %v1049 = vadd.f32 %v1047, %v1048
      %v1050 = vsel %vm152, %v1024, 0.0
      %v1051 = vrot.slane %v1050, 4
      %v1052 = vadd.f32 %v1050, %v1051
      %v1053 = vrot.slane %v1052, 2
      %v1054 = vadd.f32 %v1052, %v1053
      %v1055 = vrot.slane %v1054, 1
      %v1056 = vadd.f32 %v1054, %v1055
      %v1057 = vsel %vm152, %v1025, 0.0
      %v1058 = vrot.slane %v1057, 4
      %v1059 = vadd.f32 %v1057, %v1058
      %v1060 = vrot.slane %v1059, 2
      %v1061 = vadd.f32 %v1059, %v1060
      %v1062 = vrot.slane %v1061, 1
      %v1063 = vadd.f32 %v1061, %v1062
      %v1064 = vsel %vm152, %v1026, 0.0
      %v1065 = vrot.slane %v1064, 4
      %v1066 = vadd.f32 %v1064, %v1065
      %v1067 = vrot.slane %v1066, 2
      %v1068 = vadd.f32 %v1066, %v1067
      %v1069 = vrot.slane %v1068, 1
      %v1070 = vadd.f32 %v1068, %v1069
      %v1071 = vsel %vm152, %v1027, 0.0
      %v1072 = vrot.slane %v1071, 4
      %v1073 = vadd.f32 %v1071, %v1072
      %v1074 = vrot.slane %v1073, 2
      %v1075 = vadd.f32 %v1073, %v1074
      %v1076 = vrot.slane %v1075, 1
      %v1077 = vadd.f32 %v1075, %v1076
      %v1078 = vsel %vm152, %v1028, 0.0
      %v1079 = vrot.slane %v1078, 4
      %v1080 = vadd.f32 %v1078, %v1079
      %v1081 = vrot.slane %v1080, 2
      %v1082 = vadd.f32 %v1080, %v1081
      %v1083 = vrot.slane %v1082, 1
      %v1084 = vadd.f32 %v1082, %v1083
      %v1085 = vsel %vm209, %v964, 0.0
      %1086 = vadd.xlane.f32.xlu0 %v1085
      %v1087 = vpop.xlane.xlu0 %1086
      %vm1096 = vcmask 1041409
      %v1097 = vsel %vm1096, %v166, %v159
      %vm1098 = vcmask 1042434
      %v1099 = vsel %vm1098, %v173, %v1097
      %vm1100 = vcmask 1043459
      %v1101 = vsel %vm1100, %v180, %v1099
      %vm1102 = vcmask 1044484
      %v1103 = vsel %vm1102, %v187, %v1101
      %vm1104 = vcmask 1045509
      %v1105 = vsel %vm1104, %v194, %v1103
      %vm1106 = vcmask 1046534
      %v1107 = vsel %vm1106, %v201, %v1105
      %vm1108 = vcmask 1047559
      %v1109 = vsel %vm1108, %v208, %v1107
      %v1119 = vsel %vm1096, %v292, %v285
      %v1120 = vsel %vm1098, %v299, %v1119
      %v1121 = vsel %vm1100, %v306, %v1120
      %v1122 = vsel %vm1102, %v313, %v1121
      %v1123 = vsel %vm1104, %v320, %v1122
      %v1124 = vsel %vm1106, %v327, %v1123
      %v1125 = vsel %vm1108, %v334, %v1124
      %1126 = vrot.lane.b32.xlu0 %v1125, 32
      %v1127 = vpop.permute.xlu0 %1126
      %v1137 = vsel %vm1096, %v417, %v410
      %v1138 = vsel %vm1098, %v424, %v1137
      %v1139 = vsel %vm1100, %v431, %v1138
      %v1140 = vsel %vm1102, %v438, %v1139
      %v1141 = vsel %vm1104, %v445, %v1140
      %v1142 = vsel %vm1106, %v452, %v1141
      %v1143 = vsel %vm1108, %v459, %v1142
      %1144 = vrot.lane.b32.xlu0 %v1143, 64
      %v1145 = vpop.permute.xlu0 %1144
      %v1155 = vsel %vm1096, %v542, %v535
      %v1156 = vsel %vm1098, %v549, %v1155
      %v1157 = vsel %vm1100, %v556, %v1156
      %v1158 = vsel %vm1102, %v563, %v1157
      %v1159 = vsel %vm1104, %v570, %v1158
      %v1160 = vsel %vm1106, %v577, %v1159
      %v1161 = vsel %vm1108, %v584, %v1160
      %1162 = vrot.lane.b32.xlu0 %v1161, 96
      %v1163 = vpop.permute.xlu0 %1162
      %v1173 = vsel %vm1096, %v667, %v660
      %v1174 = vsel %vm1098, %v674, %v1173
      %v1175 = vsel %vm1100, %v681, %v1174
      %v1176 = vsel %vm1102, %v688, %v1175
      %v1177 = vsel %vm1104, %v695, %v1176
      %v1178 = vsel %vm1106, %v702, %v1177
      %v1179 = vsel %vm1108, %v709, %v1178
      %v1189 = vsel %vm1096, %v792, %v785
      %v1190 = vsel %vm1098, %v799, %v1189
      %v1191 = vsel %vm1100, %v806, %v1190
      %v1192 = vsel %vm1102, %v813, %v1191
      %v1193 = vsel %vm1104, %v820, %v1192
      %v1194 = vsel %vm1106, %v827, %v1193
      %v1195 = vsel %vm1108, %v834, %v1194
      %1196 = vrot.lane.b32.xlu0 %v1195, 32
      %v1197 = vpop.permute.xlu0 %1196
      %v1207 = vsel %vm1096, %v917, %v910
      %v1208 = vsel %vm1098, %v924, %v1207
      %v1209 = vsel %vm1100, %v931, %v1208
      %v1210 = vsel %vm1102, %v938, %v1209
      %v1211 = vsel %vm1104, %v945, %v1210
      %v1212 = vsel %vm1106, %v952, %v1211
      %v1213 = vsel %vm1108, %v959, %v1212
      %1214 = vrot.lane.b32.xlu0 %v1213, 64
      %v1215 = vpop.permute.xlu0 %1214
      %v1225 = vsel %vm1096, %v1042, %v1035
      %v1226 = vsel %vm1098, %v1049, %v1225
      %v1227 = vsel %vm1100, %v1056, %v1226
      %v1228 = vsel %vm1102, %v1063, %v1227
      %v1229 = vsel %vm1104, %v1070, %v1228
      %v1230 = vsel %vm1106, %v1077, %v1229
      %v1231 = vsel %vm1108, %v1084, %v1230
      %1232 = vrot.lane.b32.xlu0 %v1231, 96
      %v1233 = vpop.permute.xlu0 %1232
      %v1235 = vsel %vm152, %v1109, %v1127
      %vm1236 = vcmask 523264
      %v1237 = vsel %vm1236, %v1235, %v1145
      %vm1238 = vcmask 785408
      %v1239 = vsel %vm1238, %v1237, %v1163
      %v1240 = vsel %vm152, %v1179, %v1197
      %v1241 = vsel %vm1236, %v1240, %v1215
      %v1242 = vsel %vm1238, %v1241, %v1233
      %1243 = vst [vmem:[#allocation2] sm:$0xff] %v1239
      %1244 = vst [vmem:[#allocation2 + $0x8] sm:$0xff] %v1242
      %vm1245 = vcmask 7168
      %v1246 = vsel %vm1245, %v212, %v337
      %vm1247 = vcmask 15360
      %v1248 = vsel %vm1247, %v1246, %v462
      %vm1249 = vcmask 23552
      %v1250 = vsel %vm1249, %v1248, %v587
      %vm1251 = vcmask 31744
      %v1252 = vsel %vm1251, %v1250, %v712
      %vm1253 = vcmask 39936
      %v1254 = vsel %vm1253, %v1252, %v837
      %vm1255 = vcmask 48128
      %v1256 = vsel %vm1255, %v1254, %v962
      %vm1257 = vcmask 56320
      %v1258 = vsel %vm1257, %v1256, %v1087
      %1259 = vst.msk [vmem:[#allocation3] sm:$0xff] %vm209, %v1258
    $region41: #{tpu_custom_call.1} parent=1 // pred_fallthru
      _
    %s1260 = smul.u32 0, 256
    %s1261 = scalar_lea.vmem [#allocation10], %s1260
    %v1262 = vld [vmem:[%s1261] sm:$0xff]
    %v1263 = vld [vmem:[%s1261 + $0x8] sm:$0xff]
    %v1264 = vld [vmem:[%s1261 + $0x10] sm:$0xff]
    %v1265 = vld [vmem:[%s1261 + $0x18] sm:$0xff]
    %v1266 = vld [vmem:[%s1261 + $0x20] sm:$0xff]
    %v1267 = vld [vmem:[%s1261 + $0x28] sm:$0xff]
    %v1268 = vld [vmem:[%s1261 + $0x30] sm:$0xff]
    %v1269 = vld [vmem:[%s1261 + $0x38] sm:$0xff]
    %v1270 = vld [vmem:[%s1261 + $0x40] sm:$0xff]
    %v1271 = vld [vmem:[%s1261 + $0x48] sm:$0xff]
    %v1272 = vld [vmem:[%s1261 + $0x50] sm:$0xff]
    %v1273 = vld [vmem:[%s1261 + $0x58] sm:$0xff]
    %v1274 = vld [vmem:[%s1261 + $0x60] sm:$0xff]
    %v1275 = vld [vmem:[%s1261 + $0x68] sm:$0xff]
    %v1276 = vld [vmem:[%s1261 + $0x70] sm:$0xff]
    %v1277 = vld [vmem:[%s1261 + $0x78] sm:$0xff]
    %v1278 = vld [vmem:[%s1261 + $0x80] sm:$0xff]
    %v1279 = vld [vmem:[%s1261 + $0x88] sm:$0xff]
    %v1280 = vld [vmem:[%s1261 + $0x90] sm:$0xff]
    %v1281 = vld [vmem:[%s1261 + $0x98] sm:$0xff]
    %v1282 = vld [vmem:[%s1261 + $0xa0] sm:$0xff]
    %v1283 = vld [vmem:[%s1261 + $0xa8] sm:$0xff]
    %v1284 = vld [vmem:[%s1261 + $0xb0] sm:$0xff]
    %v1285 = vld [vmem:[%s1261 + $0xb8] sm:$0xff]
    %v1286 = vld [vmem:[%s1261 + $0xc0] sm:$0xff]
    %v1287 = vld [vmem:[%s1261 + $0xc8] sm:$0xff]
    %v1288 = vld [vmem:[%s1261 + $0xd0] sm:$0xff]
    %v1289 = vld [vmem:[%s1261 + $0xd8] sm:$0xff]
    %v1290 = vld [vmem:[%s1261 + $0xe0] sm:$0xff]
    %v1291 = vld [vmem:[%s1261 + $0xe8] sm:$0xff]
    %v1292 = vld [vmem:[%s1261 + $0xf0] sm:$0xff]
    %v1293 = vld [vmem:[%s1261 + $0xf8] sm:$0xff]
    %s1294 = smul.u32 0, 8
    %s1295 = scalar_lea.vmem %s4, %s1294
    %v1296 = vld [vmem:[%s1295] sm:$0xff]
    %v1297 = vld [vmem:[#allocation2] sm:$0xff]
    %v1298 = vld [vmem:[#allocation2 + $0x8] sm:$0xff]
    %v1299 = vld [vmem:[#allocation3] sm:$0xff]
    %vm1300 = vcmask 64512
    %v1302 = vsel %vm1300, %v1299, 0
    %1304 = vmatprep.subr.mxu0 0.0
    %1305 = vmatpush1.msra.mxu0 %v1296
    %1306 = vmatprep.subr.mxu0 0.0
    %1307 = vmatpush1.msra.mxu0 0.0
    %1308 = vmatprep.subr.mxu0 0.0
    %1309 = vmatpush1.msra.mxu0 0.0
    %1310 = vmatprep.subr.mxu0 0.0
    %1311 = vmatpush1.msra.mxu0 0.0
    %1312 = vmatprep.subr.mxu0 0.0
    %1313 = vmatpush1.msra.mxu0 0.0
    %1314 = vmatprep.subr.mxu0 0.0
    %1315 = vmatpush1.msra.mxu0 0.0
    %1316 = vmatprep.subr.mxu0 0.0
    %1317 = vmatpush1.msra.mxu0 0.0
    %1318 = vmatprep.subr.mxu0 0.0
    %1319 = vmatpush1.msra.mxu0 0.0
    %1320 = vmatprep.subr.mxu0 0.0
    %1321 = vmatpush1.msra.mxu0 0.0
    %1322 = vmatprep.subr.mxu0 0.0
    %1323 = vmatpush1.msra.mxu0 0.0
    %1324 = vmatprep.subr.mxu0 0.0
    %1325 = vmatpush1.msra.mxu0 0.0
    %1326 = vmatprep.subr.mxu0 0.0
    %1327 = vmatpush1.msra.mxu0 0.0
    %1328 = vmatprep.subr.mxu0 0.0
    %1329 = vmatpush1.msra.mxu0 0.0
    %1330 = vmatprep.subr.mxu0 0.0
    %1331 = vmatpush1.msra.mxu0 0.0
    %1332 = vmatprep.subr.mxu0 0.0
    %1333 = vmatpush1.msra.mxu0 0.0
    %1334 = vmatprep.subr.mxu0 0.0
    %1335 = vmatpush1.msra.mxu0 0.0
    %1336 = vmatprep.subr.mxu0 0.0
    %1337 = vmatpush1.msra.mxu0 0.0
    %1338 = vmatprep.subr.mxu0 0.0
    %1339 = vmatpush1.msra.mxu0 0.0
    %1340 = vmatprep.subr.mxu0 0.0
    %1341 = vmatpush1.msra.mxu0 0.0
    %1342 = vmatprep.subr.mxu0 0.0
    %1343 = vmatpush1.msra.mxu0 0.0
    %1344 = vmatprep.subr.mxu0 0.0
    %1345 = vmatpush1.msra.mxu0 0.0
    %1346 = vmatprep.subr.mxu0 0.0
    %1347 = vmatpush1.msra.mxu0 0.0
    %1348 = vmatprep.subr.mxu0 0.0
    %1349 = vmatpush1.msra.mxu0 0.0
    %1350 = vmatprep.subr.mxu0 0.0
    %1351 = vmatpush1.msra.mxu0 0.0
    %1352 = vmatprep.subr.mxu0 0.0
    %1353 = vmatpush1.msra.mxu0 0.0
    %1354 = vmatprep.subr.mxu0 0.0
    %1355 = vmatpush1.msra.mxu0 0.0
    %1356 = vmatprep.subr.mxu0 0.0
    %1357 = vmatpush1.msra.mxu0 0.0
    %1358 = vmatprep.subr.mxu0 0.0
    %1359 = vmatpush1.msra.mxu0 0.0
    %1360 = vmatprep.subr.mxu0 0.0
    %1361 = vmatpush1.msra.mxu0 0.0
    %1362 = vmatprep.subr.mxu0 0.0
    %1363 = vmatpush1.msra.mxu0 0.0
    %1364 = vmatprep.subr.mxu0 0.0
    %1365 = vmatpush1.msra.mxu0 0.0
    %1366 = vmatprep.subr.mxu0 0.0
    %1367 = vmatpush1.msra.mxu0 0.0
    %1368 = vmatprep.mubr.f32.mxu0 0.0
    %1369 = vmatmul.mubr.f32.gmra.mrb[0].mxu0 %v1302
    %v1370 = vpop.f32.mrb[0].mxu0
    %v1371 = vadd.f32 0.0, %v1370
    %v1372 = vpop.f32.mrb[0].mxu0
    %1373 = vdwg.mxu0
    %1374 = vmatprep.subr.mxu0 0.0
    %1375 = vmatpush1.msra.mxu0 %v1262
    %1376 = vmatprep.subr.mxu0 0.0
    %1377 = vmatpush1.msra.mxu0 %v1263
    %1378 = vmatprep.subr.mxu0 0.0
    %1379 = vmatpush1.msra.mxu0 %v1264
    %1380 = vmatprep.subr.mxu0 0.0
    %1381 = vmatpush1.msra.mxu0 %v1265
    %1382 = vmatprep.subr.mxu0 0.0
    %1383 = vmatpush1.msra.mxu0 %v1266
    %1384 = vmatprep.subr.mxu0 0.0
    %1385 = vmatpush1.msra.mxu0 %v1267
    %1386 = vmatprep.subr.mxu0 0.0
    %1387 = vmatpush1.msra.mxu0 %v1268
    %1388 = vmatprep.subr.mxu0 0.0
    %1389 = vmatpush1.msra.mxu0 %v1269
    %1390 = vmatprep.subr.mxu0 0.0
    %1391 = vmatpush1.msra.mxu0 %v1270
    %1392 = vmatprep.subr.mxu0 0.0
    %1393 = vmatpush1.msra.mxu0 %v1271
    %1394 = vmatprep.subr.mxu0 0.0
    %1395 = vmatpush1.msra.mxu0 %v1272
    %1396 = vmatprep.subr.mxu0 0.0
    %1397 = vmatpush1.msra.mxu0 %v1273
    %1398 = vmatprep.subr.mxu0 0.0
    %1399 = vmatpush1.msra.mxu0 %v1274
    %1400 = vmatprep.subr.mxu0 0.0
    %1401 = vmatpush1.msra.mxu0 %v1275
    %1402 = vmatprep.subr.mxu0 0.0
    %1403 = vmatpush1.msra.mxu0 %v1276
    %1404 = vmatprep.subr.mxu0 0.0
    %1405 = vmatpush1.msra.mxu0 %v1277
    %1406 = vmatprep.subr.mxu0 0.0
    %1407 = vmatpush1.msra.mxu0 %v1278
    %1408 = vmatprep.subr.mxu0 0.0
    %1409 = vmatpush1.msra.mxu0 %v1279
    %1410 = vmatprep.subr.mxu0 0.0
    %1411 = vmatpush1.msra.mxu0 %v1280
    %1412 = vmatprep.subr.mxu0 0.0
    %1413 = vmatpush1.msra.mxu0 %v1281
    %1414 = vmatprep.subr.mxu0 0.0
    %1415 = vmatpush1.msra.mxu0 %v1282
    %1416 = vmatprep.subr.mxu0 0.0
    %1417 = vmatpush1.msra.mxu0 %v1283
    %1418 = vmatprep.subr.mxu0 0.0
    %1419 = vmatpush1.msra.mxu0 %v1284
    %1420 = vmatprep.subr.mxu0 0.0
    %1421 = vmatpush1.msra.mxu0 %v1285
    %1422 = vmatprep.subr.mxu0 0.0
    %1423 = vmatpush1.msra.mxu0 %v1286
    %1424 = vmatprep.subr.mxu0 0.0
    %1425 = vmatpush1.msra.mxu0 %v1287
    %1426 = vmatprep.subr.mxu0 0.0
    %1427 = vmatpush1.msra.mxu0 %v1288
    %1428 = vmatprep.subr.mxu0 0.0
    %1429 = vmatpush1.msra.mxu0 %v1289
    %1430 = vmatprep.subr.mxu0 0.0
    %1431 = vmatpush1.msra.mxu0 %v1290
    %1432 = vmatprep.subr.mxu0 0.0
    %1433 = vmatpush1.msra.mxu0 %v1291
    %1434 = vmatprep.subr.mxu0 0.0
    %1435 = vmatpush1.msra.mxu0 %v1292
    %1436 = vmatprep.subr.mxu0 0.0
    %1437 = vmatpush1.msra.mxu0 %v1293
    %1438 = vmatprep.mubr.f32.mxu0 %v1298
    %1439 = vmatmul.mubr.f32.gmra.mrb[0].mxu0 %v1297
    %v1440 = vpop.f32.mrb[0].mxu0
    %v1441 = vadd.f32 %v1371, %v1440
    %v1442 = vpop.f32.mrb[0].mxu0
    %1443 = vdwg.mxu0
    %1444 = vst [vmem:[#allocation12] sm:$0xff] %v1441
    // Predicated region
    $region42: #{tpu_custom_call.1} parent=1 // pred_check
      _
    $region43: #{tpu_custom_call.1} parent=1 // pred_check_branch
      %1446 = sbr.rel (0) target = $region45
    $region44: #{tpu_custom_call.1} parent=1 // pred_region
      %s1448 = ssub.s32 128, 128
      %1449 = vsyncadd [#allocation6], %s1448
      %s1451 = sshll.u32 [#allocation12], 4
      %s1452 = int_to_ptr.vmem [resolvable:$true] %s1451
      %1454 = dma.vmem_to_hbm [thread:$0]  %s1452, 128, %s5, [#allocation6]
    $region45: #{tpu_custom_call.1} parent=1 // pred_fallthru
      _
    // Predicated region
    $region46: #{tpu_custom_call.1} parent=1 // pred_check
      _
    $region47: #{tpu_custom_call.1} parent=1 // pred_check_branch
      %1456 = sbr.rel (0) target = $region49
    $region48: #{tpu_custom_call.1} parent=1 // pred_region
      %1457 = dma.done [#allocation6], 128
    $region49: #{tpu_custom_call.1} parent=1 // pred_fallthru
      _
    %1458 = vsyncpa [#allocation5], 1
    %1459 = vsyncpa [#allocation8], 1
    %1460 = vsyncpa [#allocation11], 1
    %1461 = vsyncpa [#allocation6], 1

</llo_original>
